<compile_context>
chip_gen: v7x
topology: tpu7x:2x2x1
jax: 0.10.0
libtpu: 0.0.40
codegen_flags: <defaults>
</compile_context>

<pallas_src>
from functools import partial

import jax
import jax.numpy as jnp
from jax.experimental import pallas as pl
from jax.experimental.pallas import tpu as pltpu

NUM_LAYERS = 4
TILE_M = 256                      # node-row tile for the tiled (large-N) path
TILE_K = 512                      # reduction tile over adjacency columns
D_PAD = 128                       # lane-dense padded feature dimension
VMEM_LIMIT = 48 * 1024 * 1024     # scoped-VMEM cap: fits v7x's 64 MiB, < v5e/v6e 128 MiB
RESIDENT_BYTES_LIMIT = 16 * 1024 * 1024   # adj+P bf16 budget for the fully-resident path


# ----------------------------- kernels -----------------------------

def _resident_kernel(adj_ref, h0_ref, w_ref, b_ref, p_ref, out_ref):
    """Whole forward in VMEM: 4 fused GCN layers + mean pool, adj read from HBM once."""
    adj = adj_ref[...]                     # bf16 [n_pad, n_pad]
    h = h0_ref[...]                        # bf16 [n_pad, 128]
    num_layers = w_ref.shape[0]
    for l in range(num_layers):
        ah = jnp.dot(adj, h, preferred_element_type=jnp.float32)            # f32
        hw = jnp.dot(ah.astype(jnp.bfloat16), w_ref[l],
                     preferred_element_type=jnp.float32) + b_ref[l]          # f32
        if l < num_layers - 1:
            hw = jnp.maximum(hw, 0.0)      # dropout p=0 -> identity
        h = hw.astype(jnp.bfloat16)
    out_ref[...] = jnp.dot(p_ref[...], h, preferred_element_type=jnp.float32)


def _make_layer_kernel(apply_relu):
    """Fused GCN layer: acc = sum_k Ahat[i,k] @ h[k]; epilogue: (acc->bf16)@W + b (+relu)."""
    def _layer_kernel(adj_ref, h_ref, w_ref, b_ref, o_ref, acc_ref):
        k = pl.program_id(1)

        @pl.when(k == 0)
        def _():
            acc_ref[...] = jnp.zeros_like(acc_ref)

        acc_ref[...] += jnp.dot(adj_ref[...], h_ref[...],
                                preferred_element_type=jnp.float32)

        @pl.when(k == pl.num_programs(1) - 1)
        def _():
            hw = jnp.dot(acc_ref[...].astype(jnp.bfloat16), w_ref[...],
                         preferred_element_type=jnp.float32) + b_ref[...]
            if apply_relu:                 # relu skipped on the last layer
                hw = jnp.maximum(hw, 0.0)
            o_ref[...] = hw.astype(o_ref.dtype)

    return _layer_kernel


def _pool_kernel(p_ref, h_ref, out_ref):
    """out = P @ h, accumulated directly into the resident f32 output block."""
    k = pl.program_id(0)

    @pl.when(k == 0)
    def _():
        out_ref[...] = jnp.zeros_like(out_ref)

    out_ref[...] += jnp.dot(p_ref[...], h_ref[...],
                            preferred_element_type=jnp.float32)


# ------------------------ pallas_call wrappers ------------------------

def _resident_forward(adj_bf16, h0_bf16, w_bf16, b_f32, p_bf16):
    g_pad = p_bf16.shape[0]
    return pl.pallas_call(
        _resident_kernel,
        out_shape=jax.ShapeDtypeStruct((g_pad, D_PAD), jnp.float32),
        compiler_params=pltpu.CompilerParams(vmem_limit_bytes=VMEM_LIMIT),
    )(adj_bf16, h0_bf16, w_bf16, b_f32, p_bf16)


def _gcn_layer_tiled(adj_bf16, h_bf16, w_bf16, b_f32, apply_relu):
    """act((Ahat @ h) @ W + b): grid = (row tiles 'parallel', K tiles 'arbitrary')."""
    n_pad = adj_bf16.shape[0]
    return pl.pallas_call(
        _make_layer_kernel(apply_relu),
        out_shape=jax.ShapeDtypeStruct((n_pad, D_PAD), jnp.bfloat16),
        grid_spec=pltpu.PrefetchScalarGridSpec(
            num_scalar_prefetch=0,
            grid=(n_pad // TILE_M, n_pad // TILE_K),
            in_specs=[
                pl.BlockSpec((TILE_M, TILE_K), lambda i, k: (i, k)),   # Ahat stream (bf16)
                pl.BlockSpec((TILE_K, D_PAD), lambda i, k: (k, 0)),    # h stream (bf16)
                pl.BlockSpec((D_PAD, D_PAD), lambda i, k: (0, 0)),     # W resident (bf16)
                pl.BlockSpec((1, D_PAD), lambda i, k: (0, 0)),         # bias resident (f32)
            ],
            out_specs=pl.BlockSpec((TILE_M, D_PAD), lambda i, k: (i, 0)),
            scratch_shapes=[pltpu.VMEM((TILE_M, D_PAD), jnp.float32)],
        ),
        compiler_params=pltpu.CompilerParams(
            dimension_semantics=("parallel", "arbitrary"),
            vmem_limit_bytes=VMEM_LIMIT,
        ),
    )(adj_bf16, h_bf16, w_bf16, b_f32)


def _mean_pool_tiled(pool_bf16, h_bf16):
    """out = P @ h with a K-tiled, output-resident f32 accumulator (P, h: bf16)."""
    g_pad, n_pad = pool_bf16.shape
    # TODO(synk): on v7x (2 TCs) this reduction-only grid runs on one core; fuse pooling
    # into the last layer's epilogue or add a parallel g-tile axis if G*N ever gets large.
    return pl.pallas_call(
        _pool_kernel,
        out_shape=jax.ShapeDtypeStruct((g_pad, D_PAD), jnp.float32),
        grid_spec=pltpu.PrefetchScalarGridSpec(
            num_scalar_prefetch=0,
            grid=(n_pad // TILE_K,),
            in_specs=[
                pl.BlockSpec((g_pad, TILE_K), lambda k: (0, k)),
                pl.BlockSpec((TILE_K, D_PAD), lambda k: (k, 0)),
            ],
            out_specs=pl.BlockSpec((g_pad, D_PAD), lambda k: (0, 0)),
        ),
        compiler_params=pltpu.CompilerParams(
            dimension_semantics=("arbitrary",),
            vmem_limit_bytes=VMEM_LIMIT,
        ),
    )(pool_bf16, h_bf16)


def _round_up(x, m):
    return ((x + m - 1) // m) * m


def _fits_resident(num_nodes, num_graphs):
    n_pad = _round_up(num_nodes, 128)
    g_pad = _round_up(num_graphs, 16)
    adj_bytes = n_pad * n_pad * 2            # bf16 adjacency
    pool_bytes = g_pad * n_pad * 2           # bf16 pooling matrix
    return adj_bytes + pool_bytes <= RESIDENT_BYTES_LIMIT   # headroom vs v7x 64 MiB VMEM


@partial(jax.jit, static_argnames=("force_tiled",))
def simple_gnn_encoder_pallas(adj_hat, x_emb, W, B, P, *, force_tiled=False):
    """Encoder forward. adj_hat [N,N], x_emb [N,D], W [L,D,D], B [L,1,D], P [G,N] -> [G,D]."""
    N, D = x_emb.shape
    G = P.shape[0]
    L = W.shape[0]
    bf16 = jnp.bfloat16

    resident = (not force_tiled) and _fits_resident(N, G)
    node_align = 128 if resident else max(TILE_M, TILE_K)
    n_pad = _round_up(N, node_align)
    g_pad = _round_up(G, 16)

    # Zero padding is semantically inert: padded adjacency rows/cols are zero, padded
    # feature columns stay zero through zero-padded W/B, padded node rows pick up the
    # bias value after '+ b' but never contaminate valid outputs because adjacency and
    # pooling columns for padded nodes are zero.
    adj_p = jnp.zeros((n_pad, n_pad), bf16).at[:N, :N].set(adj_hat.astype(bf16))
    h0 = jnp.zeros((n_pad, D_PAD), bf16).at[:N, :D].set(x_emb.astype(bf16))
    W_p = jnp.zeros((L, D_PAD, D_PAD), bf16).at[:, :D, :D].set(W.astype(bf16))
    B_p = jnp.zeros((L, 1, D_PAD), jnp.float32).at[:, :, :D].set(B)
    P_p = jnp.zeros((g_pad, n_pad), bf16).at[:G, :N].set(P.astype(bf16))

    if resident:
        out = _resident_forward(adj_p, h0, W_p, B_p, P_p)                  # [g_pad, 128] f32
    else:
        h = h0
        for l in range(L):
            h = _gcn_layer_tiled(adj_p, h, W_p[l], B_p[l],
                                 apply_relu=(l < L - 1))                   # [n_pad, 128] bf16
        out = _mean_pool_tiled(P_p, h)                                     # [g_pad, 128] f32
    return out[:G, :D]


# ------------------------- plain-JAX glue (graph prep) -------------------------

def build_normalized_adjacency(edge_index, num_nodes):
    """D^{-1/2} (A + I) D^{-1/2} (GCNConv default: undirected, add_self_loops=True)."""
    src, dst = edge_index
    A = jnp.zeros((num_nodes, num_nodes), jnp.float32)
    A = A.at[src, dst].set(1.0)
    A = A.at[dst, src].set(1.0)
    A = A + jnp.eye(num_nodes, dtype=jnp.float32)
    deg = A.sum(axis=1)
    d_inv_sqrt = 1.0 / jnp.sqrt(deg)
    return A * d_inv_sqrt[:, None] * d_inv_sqrt[None, :]


def build_mean_pool_matrix(batch, num_graphs):
    onehot = (batch[None, :] == jnp.arange(num_graphs)[:, None]).astype(jnp.float32)
    counts = onehot.sum(axis=1, keepdims=True)
    return onehot / jnp.maximum(counts, 1.0)              # [G, N]


def reference_forward_f32(adj_hat, x_emb, W, B, P):
    h = x_emb
    L = W.shape[0]
    for l in range(L):
        h = adj_hat @ (h @ W[l]) + B[l]
        if l < L - 1:
            h = jnp.maximum(h, 0.0)
    return P @ h


def reference_forward_mixed(adj_hat, x_emb, W, B, P):
    """Mimics the kernel's precision & (Ahat@h)@W reassociation: bf16 MXU operands,
    f32 accumulation, bf16 activation storage."""
    bf16 = jnp.bfloat16
    adj = adj_hat.astype(bf16)
    h = x_emb.astype(bf16)
    L = W.shape[0]
    for l in range(L):
        ah = jnp.dot(adj, h, preferred_element_type=jnp.float32)
        hw = jnp.dot(ah.astype(bf16), W[l].astype(bf16),
                     preferred_element_type=jnp.float32) + B[l]
        if l < L - 1:
            hw = jnp.maximum(hw, 0.0)
        h = hw.astype(bf16)
    return jnp.dot(P.astype(bf16), h, preferred_element_type=jnp.float32)


if __name__ == "__main__":
    GRAPHS = 4
    NODES_PER_GRAPH = 40
    N = GRAPHS * NODES_PER_GRAPH      # 160 nodes
    D = 32                            # d_model (padded to 128 lanes inside the wrapper)
    IN_SIZE = 8                       # embedding vocab size (in_size)
    L = NUM_LAYERS

    key = jax.random.PRNGKey(0)
    k_tok, k_emb, k_w, k_b = jax.random.split(key, 4)

    # Node "types" -> nn.Embedding(in_size, d_model) lookup.
    # TODO(synk): the integer embedding gather + edge_index->Ahat normalization stay
    # in plain JAX glue (a dense Pallas gather isn't worthwhile at this vocab size).
    x_tokens = jax.random.randint(k_tok, (N,), 0, IN_SIZE)
    emb_table = 0.1 * jax.random.normal(k_emb, (IN_SIZE, D), dtype=jnp.float32)
    x_emb = emb_table[x_tokens]                                    # [N, D]

    # Deterministic edges: chain within each graph + one closing long edge.
    src, dst = [], []
    for g in range(GRAPHS):
        base = g * NODES_PER_GRAPH
        for i in range(NODES_PER_GRAPH - 1):
            src.append(base + i)
            dst.append(base + i + 1)
        src.append(base)
        dst.append(base + NODES_PER_GRAPH - 1)
    edge_index = jnp.array([src, dst], dtype=jnp.int32)
    batch = jnp.repeat(jnp.arange(GRAPHS, dtype=jnp.int32), NODES_PER_GRAPH)

    # GCNConv params: linear weight W_l (no bias in lin) + separate bias b_l.
    W = jax.random.normal(k_w, (L, D, D), dtype=jnp.float32) / jnp.sqrt(float(D))
    B = 0.01 * jax.random.normal(k_b, (L, 1, D), dtype=jnp.float32)

    adj_hat = build_normalized_adjacency(edge_index, N)            # [N, N]
    P = build_mean_pool_matrix(batch, GRAPHS)                      # [G, N]

    # Default path: fully-resident single-kernel forward (small graph).
    out_res = simple_gnn_encoder_pallas(adj_hat, x_emb, W, B, P)
    # Also exercise the tiled large-N path (padded to 512 nodes here).
    out_til = simple_gnn_encoder_pallas(adj_hat, x_emb, W, B, P, force_tiled=True)
    out_res, out_til = jax.block_until_ready((out_res, out_til))
    assert out_res.shape == (GRAPHS, D)
    assert out_til.shape == (GRAPHS, D)

    ref_mixed = reference_forward_mixed(adj_hat, x_emb, W, B, P)
    ref_f32 = reference_forward_f32(adj_hat, x_emb, W, B, P)
    for name, out in (("resident", out_res), ("tiled", out_til)):
        err_mixed = float(jnp.max(jnp.abs(out - ref_mixed)))
        err_f32 = float(jnp.max(jnp.abs(out - ref_f32)))
        assert jnp.allclose(out, ref_mixed, rtol=2e-2, atol=5e-3), \
            f"{name}: mixed-ref err={err_mixed}"
        assert jnp.allclose(out, ref_f32, rtol=1.5e-1, atol=5e-2), \
            f"{name}: f32-ref err={err_f32}"

    print("KERNEL_OK")
</pallas_src>

<mosaic_0001>
module attributes {stable_mosaic.version = 11 : i64} {
  func.func @_resident_kernel(%arg0: memref<256x256xbf16, #tpu.memory_space<vmem>>, %arg1: memref<256x128xbf16, #tpu.memory_space<vmem>>, %arg2: memref<4x128x128xbf16, #tpu.memory_space<vmem>>, %arg3: memref<4x1x128xf32, #tpu.memory_space<vmem>>, %arg4: memref<16x256xbf16, #tpu.memory_space<vmem>>, %arg5: memref<16x128xf32, #tpu.memory_space<vmem>>) attributes {dimension_semantics = [], scalar_prefetch = 0 : i64, scratch_operands = 0 : i64, tpu.core_type = #tpu.core_type<tc>} {
    %c0 = arith.constant 0 : index
    %c0_0 = arith.constant 0 : index
    %0 = vector.load %arg0[%c0, %c0_0] : memref<256x256xbf16, #tpu.memory_space<vmem>>, vector<256x256xbf16>
    %c0_1 = arith.constant 0 : index
    %c0_2 = arith.constant 0 : index
    %1 = vector.load %arg1[%c0_1, %c0_2] : memref<256x128xbf16, #tpu.memory_space<vmem>>, vector<256x128xbf16>
    %cst = arith.constant dense<0.000000e+00> : vector<256x128xf32>
    %2 = tpu.matmul %0, %1, %cst {dimension_numbers = #tpu.dot_dimension_numbers<[1], [0], [0], [1], [0, 0, 1, 1], [], []>} : vector<256x256xbf16>, vector<256x128xbf16>, vector<256x128xf32> -> vector<256x128xf32>
    %3 = arith.truncf %2 : vector<256x128xf32> to vector<256x128xbf16>
    %c0_3 = arith.constant 0 : index
    %c0_4 = arith.constant 0 : index
    %c0_5 = arith.constant 0 : index
    %4 = vector.load %arg2[%c0_3, %c0_4, %c0_5] : memref<4x128x128xbf16, #tpu.memory_space<vmem>>, vector<1x128x128xbf16>
    %5 = vector.shape_cast %4 : vector<1x128x128xbf16> to vector<128x128xbf16>
    %cst_6 = arith.constant dense<0.000000e+00> : vector<256x128xf32>
    %6 = tpu.matmul %3, %5, %cst_6 {dimension_numbers = #tpu.dot_dimension_numbers<[1], [0], [0], [1], [0, 0, 1, 1], [], []>} : vector<256x128xbf16>, vector<128x128xbf16>, vector<256x128xf32> -> vector<256x128xf32>
    %c0_7 = arith.constant 0 : index
    %c0_8 = arith.constant 0 : index
    %c0_9 = arith.constant 0 : index
    %7 = vector.load %arg3[%c0_7, %c0_8, %c0_9] : memref<4x1x128xf32, #tpu.memory_space<vmem>>, vector<1x1x128xf32>
    %8 = vector.shape_cast %7 : vector<1x1x128xf32> to vector<1x128xf32>
    %9 = vector.broadcast %8 : vector<1x128xf32> to vector<256x128xf32>
    %10 = arith.addf %6, %9 : vector<256x128xf32>
    %cst_10 = arith.constant 0.000000e+00 : f32
    %11 = vector.broadcast %cst_10 : f32 to vector<256x128xf32>
    %12 = arith.maximumf %10, %11 : vector<256x128xf32>
    %13 = arith.truncf %12 : vector<256x128xf32> to vector<256x128xbf16>
    %cst_11 = arith.constant dense<0.000000e+00> : vector<256x128xf32>
    %14 = tpu.matmul %0, %13, %cst_11 {dimension_numbers = #tpu.dot_dimension_numbers<[1], [0], [0], [1], [0, 0, 1, 1], [], []>} : vector<256x256xbf16>, vector<256x128xbf16>, vector<256x128xf32> -> vector<256x128xf32>
    %15 = arith.truncf %14 : vector<256x128xf32> to vector<256x128xbf16>
    %c1 = arith.constant 1 : index
    %c0_12 = arith.constant 0 : index
    %c0_13 = arith.constant 0 : index
    %16 = vector.load %arg2[%c1, %c0_12, %c0_13] : memref<4x128x128xbf16, #tpu.memory_space<vmem>>, vector<1x128x128xbf16>
    %17 = vector.shape_cast %16 : vector<1x128x128xbf16> to vector<128x128xbf16>
    %cst_14 = arith.constant dense<0.000000e+00> : vector<256x128xf32>
    %18 = tpu.matmul %15, %17, %cst_14 {dimension_numbers = #tpu.dot_dimension_numbers<[1], [0], [0], [1], [0, 0, 1, 1], [], []>} : vector<256x128xbf16>, vector<128x128xbf16>, vector<256x128xf32> -> vector<256x128xf32>
    %c1_15 = arith.constant 1 : index
    %c0_16 = arith.constant 0 : index
    %c0_17 = arith.constant 0 : index
    %19 = vector.load %arg3[%c1_15, %c0_16, %c0_17] : memref<4x1x128xf32, #tpu.memory_space<vmem>>, vector<1x1x128xf32>
    %20 = vector.shape_cast %19 : vector<1x1x128xf32> to vector<1x128xf32>
    %21 = vector.broadcast %20 : vector<1x128xf32> to vector<256x128xf32>
    %22 = arith.addf %18, %21 : vector<256x128xf32>
    %cst_18 = arith.constant 0.000000e+00 : f32
    %23 = vector.broadcast %cst_18 : f32 to vector<256x128xf32>
    %24 = arith.maximumf %22, %23 : vector<256x128xf32>
    %25 = arith.truncf %24 : vector<256x128xf32> to vector<256x128xbf16>
    %cst_19 = arith.constant dense<0.000000e+00> : vector<256x128xf32>
    %26 = tpu.matmul %0, %25, %cst_19 {dimension_numbers = #tpu.dot_dimension_numbers<[1], [0], [0], [1], [0, 0, 1, 1], [], []>} : vector<256x256xbf16>, vector<256x128xbf16>, vector<256x128xf32> -> vector<256x128xf32>
    %27 = arith.truncf %26 : vector<256x128xf32> to vector<256x128xbf16>
    %c2 = arith.constant 2 : index
    %c0_20 = arith.constant 0 : index
    %c0_21 = arith.constant 0 : index
    %28 = vector.load %arg2[%c2, %c0_20, %c0_21] : memref<4x128x128xbf16, #tpu.memory_space<vmem>>, vector<1x128x128xbf16>
    %29 = vector.shape_cast %28 : vector<1x128x128xbf16> to vector<128x128xbf16>
    %cst_22 = arith.constant dense<0.000000e+00> : vector<256x128xf32>
    %30 = tpu.matmul %27, %29, %cst_22 {dimension_numbers = #tpu.dot_dimension_numbers<[1], [0], [0], [1], [0, 0, 1, 1], [], []>} : vector<256x128xbf16>, vector<128x128xbf16>, vector<256x128xf32> -> vector<256x128xf32>
    %c2_23 = arith.constant 2 : index
    %c0_24 = arith.constant 0 : index
    %c0_25 = arith.constant 0 : index
    %31 = vector.load %arg3[%c2_23, %c0_24, %c0_25] : memref<4x1x128xf32, #tpu.memory_space<vmem>>, vector<1x1x128xf32>
    %32 = vector.shape_cast %31 : vector<1x1x128xf32> to vector<1x128xf32>
    %33 = vector.broadcast %32 : vector<1x128xf32> to vector<256x128xf32>
    %34 = arith.addf %30, %33 : vector<256x128xf32>
    %cst_26 = arith.constant 0.000000e+00 : f32
    %35 = vector.broadcast %cst_26 : f32 to vector<256x128xf32>
    %36 = arith.maximumf %34, %35 : vector<256x128xf32>
    %37 = arith.truncf %36 : vector<256x128xf32> to vector<256x128xbf16>
    %cst_27 = arith.constant dense<0.000000e+00> : vector<256x128xf32>
    %38 = tpu.matmul %0, %37, %cst_27 {dimension_numbers = #tpu.dot_dimension_numbers<[1], [0], [0], [1], [0, 0, 1, 1], [], []>} : vector<256x256xbf16>, vector<256x128xbf16>, vector<256x128xf32> -> vector<256x128xf32>
    %39 = arith.truncf %38 : vector<256x128xf32> to vector<256x128xbf16>
    %c3 = arith.constant 3 : index
    %c0_28 = arith.constant 0 : index
    %c0_29 = arith.constant 0 : index
    %40 = vector.load %arg2[%c3, %c0_28, %c0_29] : memref<4x128x128xbf16, #tpu.memory_space<vmem>>, vector<1x128x128xbf16>
    %41 = vector.shape_cast %40 : vector<1x128x128xbf16> to vector<128x128xbf16>
    %cst_30 = arith.constant dense<0.000000e+00> : vector<256x128xf32>
    %42 = tpu.matmul %39, %41, %cst_30 {dimension_numbers = #tpu.dot_dimension_numbers<[1], [0], [0], [1], [0, 0, 1, 1], [], []>} : vector<256x128xbf16>, vector<128x128xbf16>, vector<256x128xf32> -> vector<256x128xf32>
    %c3_31 = arith.constant 3 : index
    %c0_32 = arith.constant 0 : index
    %c0_33 = arith.constant 0 : index
    %43 = vector.load %arg3[%c3_31, %c0_32, %c0_33] : memref<4x1x128xf32, #tpu.memory_space<vmem>>, vector<1x1x128xf32>
    %44 = vector.shape_cast %43 : vector<1x1x128xf32> to vector<1x128xf32>
    %45 = vector.broadcast %44 : vector<1x128xf32> to vector<256x128xf32>
    %46 = arith.addf %42, %45 : vector<256x128xf32>
    %47 = arith.truncf %46 : vector<256x128xf32> to vector<256x128xbf16>
    %c0_34 = arith.constant 0 : index
    %c0_35 = arith.constant 0 : index
    %48 = vector.load %arg4[%c0_34, %c0_35] : memref<16x256xbf16, #tpu.memory_space<vmem>>, vector<16x256xbf16>
    %cst_36 = arith.constant dense<0.000000e+00> : vector<16x128xf32>
    %49 = tpu.matmul %48, %47, %cst_36 {dimension_numbers = #tpu.dot_dimension_numbers<[1], [0], [0], [1], [0, 0, 1, 1], [], []>} : vector<16x256xbf16>, vector<256x128xbf16>, vector<16x128xf32> -> vector<16x128xf32>
    %c0_37 = arith.constant 0 : index
    %c0_38 = arith.constant 0 : index
    %50 = vector.load %arg5[%c0_37, %c0_38] : memref<16x128xf32, #tpu.memory_space<vmem>>, vector<16x128xf32>
    tpu.vector_store %arg5[%c0_37, %c0_38], %49 {strides = array<i32>} : memref<16x128xf32, #tpu.memory_space<vmem>>, vector<16x128xf32>,
    return
  }
}

</mosaic_0001>

<llo_original>
// kernel: simple_gnn_encoder_pallas.1
$region0: #{simple_gnn_encoder_pallas.1}
  #allocation0 [shape = 'u32[]', space=smem, size = 0x4, offset = 0x4, fixed_abs, tag = 'smem constant byte address 0x4 - core index']
  #allocation1 [shape = 'u32[144,128]{1,0:T(1,128)}', space=vmem, size = 0x12000, scoped, tag = 'internal scratch']
  %s0 = inlined_call_operand.vmem [shape: bf16[256,256], index: 0, kind: input, shape index: {}]
  %s1 = inlined_call_operand.vmem [shape: bf16[256,128], index: 1, kind: input, shape index: {}]
  %s2 = inlined_call_operand.vmem [shape: bf16[4,128,128], index: 2, kind: input, shape index: {}]
  %s3 = inlined_call_operand.vmem [shape: f32[4,1,128], index: 3, kind: input, shape index: {}]
  %s4 = inlined_call_operand.vmem [shape: bf16[16,256], index: 4, kind: input, shape index: {}]
  %s5 = inlined_call_operand.vmem [shape: f32[16,128], index: 5, kind: output, shape index: {}]
  %s6 = sld [smem:[#allocation0]]
  $region30: #{simple_gnn_encoder_pallas.1} parent=0
    _
  %s8 = ssub.s32 1, %s6
  %s9 = scalar_select 0, %s8, %s6
  // Predicated region
  $region2: #{simple_gnn_encoder_pallas.1} parent=0 // pred_check
    _
  $region3: #{simple_gnn_encoder_pallas.1} parent=0 // pred_check_branch
    %11 = sbr.rel (0) target = $region5
  $region4: #{simple_gnn_encoder_pallas.1} parent=0 // pred_region
    _
  $region5: #{simple_gnn_encoder_pallas.1} parent=0 // pred_fallthru
    _
  // Predicated region
  $region6: #{simple_gnn_encoder_pallas.1} parent=0 // pred_check
    _
  $region7: #{simple_gnn_encoder_pallas.1} parent=0 // pred_check_branch
    %13 = sbr.rel (0) target = $region9
  $region8: #{simple_gnn_encoder_pallas.1} parent=0 // pred_region
    _
  $region9: #{simple_gnn_encoder_pallas.1} parent=0 // pred_fallthru
    _
  // Predicated region
  $region10: #{simple_gnn_encoder_pallas.1} parent=0 // pred_check
    _
  $region11: #{simple_gnn_encoder_pallas.1} parent=0 // pred_check_branch
    %15 = sbr.rel (0) target = $region13
  $region12: #{simple_gnn_encoder_pallas.1} parent=0 // pred_region
    _
  $region13: #{simple_gnn_encoder_pallas.1} parent=0 // pred_fallthru
    _
  // Predicated region
  $region14: #{simple_gnn_encoder_pallas.1} parent=0 // pred_check
    _
  $region15: #{simple_gnn_encoder_pallas.1} parent=0 // pred_check_branch
    %17 = sbr.rel (0) target = $region17
  $region16: #{simple_gnn_encoder_pallas.1} parent=0 // pred_region
    _
  $region17: #{simple_gnn_encoder_pallas.1} parent=0 // pred_fallthru
    _
  // Predicated region
  $region18: #{simple_gnn_encoder_pallas.1} parent=0 // pred_check
    _
  $region19: #{simple_gnn_encoder_pallas.1} parent=0 // pred_check_branch
    %19 = sbr.rel (0) target = $region21
  $region20: #{simple_gnn_encoder_pallas.1} parent=0 // pred_region
    _
  $region21: #{simple_gnn_encoder_pallas.1} parent=0 // pred_fallthru
    _
  %v21 = vld [vmem:[%s0] sm:$0xff]
  %v22 = vld [vmem:[%s0 + $0x8] sm:$0xff]
  %v23 = vld [vmem:[%s0 + $0x10] sm:$0xff]
  %v24 = vld [vmem:[%s0 + $0x18] sm:$0xff]
  %v25 = vld [vmem:[%s0 + $0x20] sm:$0xff]
  %v26 = vld [vmem:[%s0 + $0x28] sm:$0xff]
  %v27 = vld [vmem:[%s0 + $0x30] sm:$0xff]
  %v28 = vld [vmem:[%s0 + $0x38] sm:$0xff]
  %v29 = vld [vmem:[%s0 + $0x40] sm:$0xff]
  %v30 = vld [vmem:[%s0 + $0x48] sm:$0xff]
  %v31 = vld [vmem:[%s0 + $0x50] sm:$0xff]
  %v32 = vld [vmem:[%s0 + $0x58] sm:$0xff]
  %v33 = vld [vmem:[%s0 + $0x60] sm:$0xff]
  %v34 = vld [vmem:[%s0 + $0x68] sm:$0xff]
  %v35 = vld [vmem:[%s0 + $0x70] sm:$0xff]
  %v36 = vld [vmem:[%s0 + $0x78] sm:$0xff]
  %v37 = vld [vmem:[%s0 + $0x80] sm:$0xff]
  %v38 = vld [vmem:[%s0 + $0x88] sm:$0xff]
  %v39 = vld [vmem:[%s0 + $0x90] sm:$0xff]
  %v40 = vld [vmem:[%s0 + $0x98] sm:$0xff]
  %v41 = vld [vmem:[%s0 + $0xa0] sm:$0xff]
  %v42 = vld [vmem:[%s0 + $0xa8] sm:$0xff]
  %v43 = vld [vmem:[%s0 + $0xb0] sm:$0xff]
  %v44 = vld [vmem:[%s0 + $0xb8] sm:$0xff]
  %v45 = vld [vmem:[%s0 + $0xc0] sm:$0xff]
  %v46 = vld [vmem:[%s0 + $0xc8] sm:$0xff]
  %v47 = vld [vmem:[%s0 + $0xd0] sm:$0xff]
  %v48 = vld [vmem:[%s0 + $0xd8] sm:$0xff]
  %v49 = vld [vmem:[%s0 + $0xe0] sm:$0xff]
  %v50 = vld [vmem:[%s0 + $0xe8] sm:$0xff]
  %v51 = vld [vmem:[%s0 + $0xf0] sm:$0xff]
  %v52 = vld [vmem:[%s0 + $0xf8] sm:$0xff]
  %v53 = vld [vmem:[%s1] sm:$0xf]
  %v54 = vld [vmem:[%s1 + $0x4] sm:$0xf]
  %v55 = vld [vmem:[%s1 + $0x8] sm:$0xf]
  %v56 = vld [vmem:[%s1 + $0xc] sm:$0xf]
  %v57 = vld [vmem:[%s1 + $0x10] sm:$0xf]
  %v58 = vld [vmem:[%s1 + $0x14] sm:$0xf]
  %v59 = vld [vmem:[%s1 + $0x18] sm:$0xf]
  %v60 = vld [vmem:[%s1 + $0x1c] sm:$0xf]
  %v61 = vld [vmem:[%s1 + $0x20] sm:$0xf]
  %v62 = vld [vmem:[%s1 + $0x24] sm:$0xf]
  %v63 = vld [vmem:[%s1 + $0x28] sm:$0xf]
  %v64 = vld [vmem:[%s1 + $0x2c] sm:$0xf]
  %v65 = vld [vmem:[%s1 + $0x30] sm:$0xf]
  %v66 = vld [vmem:[%s1 + $0x34] sm:$0xf]
  %v67 = vld [vmem:[%s1 + $0x38] sm:$0xf]
  %v68 = vld [vmem:[%s1 + $0x3c] sm:$0xf]
  %v69 = vld [vmem:[%s1 + $0x40] sm:$0xf]
  %v70 = vld [vmem:[%s1 + $0x44] sm:$0xf]
  %v71 = vld [vmem:[%s1 + $0x48] sm:$0xf]
  %v72 = vld [vmem:[%s1 + $0x4c] sm:$0xf]
  %v73 = vld [vmem:[%s1 + $0x50] sm:$0xf]
  %v74 = vld [vmem:[%s1 + $0x54] sm:$0xf]
  %v75 = vld [vmem:[%s1 + $0x58] sm:$0xf]
  %v76 = vld [vmem:[%s1 + $0x5c] sm:$0xf]
  %v77 = vld [vmem:[%s1 + $0x60] sm:$0xf]
  %v78 = vld [vmem:[%s1 + $0x64] sm:$0xf]
  %v79 = vld [vmem:[%s1 + $0x68] sm:$0xf]
  %v80 = vld [vmem:[%s1 + $0x6c] sm:$0xf]
  %v81 = vld [vmem:[%s1 + $0x70] sm:$0xf]
  %v82 = vld [vmem:[%s1 + $0x74] sm:$0xf]
  %v83 = vld [vmem:[%s1 + $0x78] sm:$0xf]
  %v84 = vld [vmem:[%s1 + $0x7c] sm:$0xf]
  %v117 = vunpack.c.l.b16 %v21
  %v118 = vunpack.c.h.b16 %v21
  %v119 = vunpack.c.l.b16 %v22
  %v120 = vunpack.c.h.b16 %v22
  %v121 = vunpack.c.l.b16 %v23
  %v122 = vunpack.c.h.b16 %v23
  %v123 = vunpack.c.l.b16 %v24
  %v124 = vunpack.c.h.b16 %v24
  %v125 = vunpack.c.l.b16 %v25
  %v126 = vunpack.c.h.b16 %v25
  %v127 = vunpack.c.l.b16 %v26
  %v128 = vunpack.c.h.b16 %v26
  %v129 = vunpack.c.l.b16 %v27
  %v130 = vunpack.c.h.b16 %v27
  %v131 = vunpack.c.l.b16 %v28
  %v132 = vunpack.c.h.b16 %v28
  %v133 = vunpack.c.l.b16 %v29
  %v134 = vunpack.c.h.b16 %v29
  %v135 = vunpack.c.l.b16 %v30
  %v136 = vunpack.c.h.b16 %v30
  %v137 = vunpack.c.l.b16 %v31
  %v138 = vunpack.c.h.b16 %v31
  %v139 = vunpack.c.l.b16 %v32
  %v140 = vunpack.c.h.b16 %v32
  %v141 = vunpack.c.l.b16 %v33
  %v142 = vunpack.c.h.b16 %v33
  %v143 = vunpack.c.l.b16 %v34
  %v144 = vunpack.c.h.b16 %v34
  %v145 = vunpack.c.l.b16 %v35
  %v146 = vunpack.c.h.b16 %v35
  %v147 = vunpack.c.l.b16 %v36
  %v148 = vunpack.c.h.b16 %v36
  %v149 = vunpack.c.l.b16 %v37
  %v150 = vunpack.c.h.b16 %v37
  %v151 = vunpack.c.l.b16 %v38
  %v152 = vunpack.c.h.b16 %v38
  %v153 = vunpack.c.l.b16 %v39
  %v154 = vunpack.c.h.b16 %v39
  %v155 = vunpack.c.l.b16 %v40
  %v156 = vunpack.c.h.b16 %v40
  %v157 = vunpack.c.l.b16 %v41
  %v158 = vunpack.c.h.b16 %v41
  %v159 = vunpack.c.l.b16 %v42
  %v160 = vunpack.c.h.b16 %v42
  %v161 = vunpack.c.l.b16 %v43
  %v162 = vunpack.c.h.b16 %v43
  %v163 = vunpack.c.l.b16 %v44
  %v164 = vunpack.c.h.b16 %v44
  %v165 = vunpack.c.l.b16 %v45
  %v166 = vunpack.c.h.b16 %v45
  %v167 = vunpack.c.l.b16 %v46
  %v168 = vunpack.c.h.b16 %v46
  %v169 = vunpack.c.l.b16 %v47
  %v170 = vunpack.c.h.b16 %v47
  %v171 = vunpack.c.l.b16 %v48
  %v172 = vunpack.c.h.b16 %v48
  %v173 = vunpack.c.l.b16 %v49
  %v174 = vunpack.c.h.b16 %v49
  %v175 = vunpack.c.l.b16 %v50
  %v176 = vunpack.c.h.b16 %v50
  %v177 = vunpack.c.l.b16 %v51
  %v178 = vunpack.c.h.b16 %v51
  %v179 = vunpack.c.l.b16 %v52
  %v180 = vunpack.c.h.b16 %v52
  %v181 = vpack.c.b16 %v119, %v117
  %v182 = vpack.c.b16 %v120, %v118
  %v183 = vpack.c.b16 %v123, %v121
  %v184 = vpack.c.b16 %v124, %v122
  %v185 = vpack.c.b16 %v127, %v125
  %v186 = vpack.c.b16 %v128, %v126
  %v187 = vpack.c.b16 %v131, %v129
  %v188 = vpack.c.b16 %v132, %v130
  %v189 = vpack.c.b16 %v135, %v133
  %v190 = vpack.c.b16 %v136, %v134
  %v191 = vpack.c.b16 %v139, %v137
  %v192 = vpack.c.b16 %v140, %v138
  %v193 = vpack.c.b16 %v143, %v141
  %v194 = vpack.c.b16 %v144, %v142
  %v195 = vpack.c.b16 %v147, %v145
  %v196 = vpack.c.b16 %v148, %v146
  %v197 = vpack.c.b16 %v151, %v149
  %v198 = vpack.c.b16 %v152, %v150
  %v199 = vpack.c.b16 %v155, %v153
  %v200 = vpack.c.b16 %v156, %v154
  %v201 = vpack.c.b16 %v159, %v157
  %v202 = vpack.c.b16 %v160, %v158
  %v203 = vpack.c.b16 %v163, %v161
  %v204 = vpack.c.b16 %v164, %v162
  %v205 = vpack.c.b16 %v167, %v165
  %v206 = vpack.c.b16 %v168, %v166
  %v207 = vpack.c.b16 %v171, %v169
  %v208 = vpack.c.b16 %v172, %v170
  %v209 = vpack.c.b16 %v175, %v173
  %v210 = vpack.c.b16 %v176, %v174
  %v211 = vpack.c.b16 %v179, %v177
  %v212 = vpack.c.b16 %v180, %v178
  %v277 = vunpack.c.l.b16 %v53
  %v278 = vunpack.c.l.b16 %v54
  %v279 = vunpack.c.l.b16 %v55
  %v280 = vunpack.c.l.b16 %v56
  %v281 = vunpack.c.l.b16 %v57
  %v282 = vunpack.c.l.b16 %v58
  %v283 = vunpack.c.l.b16 %v59
  %v284 = vunpack.c.l.b16 %v60
  %v285 = vunpack.c.l.b16 %v61
  %v286 = vunpack.c.l.b16 %v62
  %v287 = vunpack.c.l.b16 %v63
  %v288 = vunpack.c.l.b16 %v64
  %v289 = vunpack.c.l.b16 %v65
  %v290 = vunpack.c.l.b16 %v66
  %v291 = vunpack.c.l.b16 %v67
  %v292 = vunpack.c.l.b16 %v68
  %v293 = vunpack.c.l.b16 %v69
  %v294 = vunpack.c.l.b16 %v70
  %v295 = vunpack.c.l.b16 %v71
  %v296 = vunpack.c.l.b16 %v72
  %v297 = vunpack.c.l.b16 %v73
  %v298 = vunpack.c.l.b16 %v74
  %v299 = vunpack.c.l.b16 %v75
  %v300 = vunpack.c.l.b16 %v76
  %v301 = vunpack.c.l.b16 %v77
  %v302 = vunpack.c.l.b16 %v78
  %v303 = vunpack.c.l.b16 %v79
  %v304 = vunpack.c.l.b16 %v80
  %v305 = vunpack.c.l.b16 %v81
  %v306 = vunpack.c.l.b16 %v82
  %v307 = vunpack.c.l.b16 %v83
  %v308 = vunpack.c.l.b16 %v84
  %v309 = vpack.c.b16 %v278, %v277
  %v310 = vpack.c.b16 %v280, %v279
  %v311 = vpack.c.b16 %v282, %v281
  %v312 = vpack.c.b16 %v284, %v283
  %v313 = vpack.c.b16 %v286, %v285
  %v314 = vpack.c.b16 %v288, %v287
  %v315 = vpack.c.b16 %v290, %v289
  %v316 = vpack.c.b16 %v292, %v291
  %v317 = vpack.c.b16 %v294, %v293
  %v318 = vpack.c.b16 %v296, %v295
  %v319 = vpack.c.b16 %v298, %v297
  %v320 = vpack.c.b16 %v300, %v299
  %v321 = vpack.c.b16 %v302, %v301
  %v322 = vpack.c.b16 %v304, %v303
  %v323 = vpack.c.b16 %v306, %v305
  %v324 = vpack.c.b16 %v308, %v307
  %341 = vmatprep.subr.bf16.mxu0 0
  %342 = vmatpush1.bf16.msra.mxu0 %v309
  %343 = vmatprep.subr.bf16.mxu0 0
  %344 = vmatpush1.bf16.msra.mxu0 %v310
  %345 = vmatprep.subr.bf16.mxu0 0
  %346 = vmatpush1.bf16.msra.mxu0 %v311
  %347 = vmatprep.subr.bf16.mxu0 0
  %348 = vmatpush1.bf16.msra.mxu0 %v312
  %349 = vmatprep.subr.bf16.mxu0 0
  %350 = vmatpush1.bf16.msra.mxu0 %v313
  %351 = vmatprep.subr.bf16.mxu0 0
  %352 = vmatpush1.bf16.msra.mxu0 %v314
  %353 = vmatprep.subr.bf16.mxu0 0
  %354 = vmatpush1.bf16.msra.mxu0 %v315
  %355 = vmatprep.subr.bf16.mxu0 0
  %356 = vmatpush1.bf16.msra.mxu0 %v316
  %357 = vmatprep.subr.bf16.mxu0 0
  %358 = vmatpush1.bf16.msra.mxu0 %v317
  %359 = vmatprep.subr.bf16.mxu0 0
  %360 = vmatpush1.bf16.msra.mxu0 %v318
  %361 = vmatprep.subr.bf16.mxu0 0
  %362 = vmatpush1.bf16.msra.mxu0 %v319
  %363 = vmatprep.subr.bf16.mxu0 0
  %364 = vmatpush1.bf16.msra.mxu0 %v320
  %365 = vmatprep.subr.bf16.mxu0 0
  %366 = vmatpush1.bf16.msra.mxu0 %v321
  %367 = vmatprep.subr.bf16.mxu0 0
  %368 = vmatpush1.bf16.msra.mxu0 %v322
  %369 = vmatprep.subr.bf16.mxu0 0
  %370 = vmatpush1.bf16.msra.mxu0 %v323
  %371 = vmatprep.subr.bf16.mxu0 0
  %372 = vmatpush1.bf16.msra.mxu0 %v324
  %373 = vmatprep.mubr.bf16.mxu0 %v182
  %374 = vmatmul.mubr.bf16.gmra.mrb[0].mxu0 %v181
  %v375 = vpop.f32.mrb[0].mxu0
  %v376 = vadd.f32 0.0, %v375
  %v377 = vpop.f32.mrb[0].mxu0
  %v378 = vpop.f32.mrb[0].mxu0
  %v379 = vadd.f32 0.0, %v378
  %v380 = vpop.f32.mrb[0].mxu0
  %381 = vmatprep.mubr.bf16.mxu0 %v184
  %382 = vmatmul.mubr.bf16.gmra.mrb[0].mxu0 %v183
  %v383 = vpop.f32.mrb[0].mxu0
  %v384 = vadd.f32 0.0, %v383
  %v385 = vpop.f32.mrb[0].mxu0
  %v386 = vpop.f32.mrb[0].mxu0
  %v387 = vadd.f32 0.0, %v386
  %v388 = vpop.f32.mrb[0].mxu0
  %389 = vmatprep.mubr.bf16.mxu0 %v186
  %390 = vmatmul.mubr.bf16.gmra.mrb[0].mxu0 %v185
  %v391 = vpop.f32.mrb[0].mxu0
  %v392 = vadd.f32 0.0, %v391
  %v393 = vpop.f32.mrb[0].mxu0
  %v394 = vpop.f32.mrb[0].mxu0
  %v395 = vadd.f32 0.0, %v394
  %v396 = vpop.f32.mrb[0].mxu0
  %397 = vmatprep.mubr.bf16.mxu0 %v188
  %398 = vmatmul.mubr.bf16.gmra.mrb[0].mxu0 %v187
  %v399 = vpop.f32.mrb[0].mxu0
  %v400 = vadd.f32 0.0, %v399
  %v401 = vpop.f32.mrb[0].mxu0
  %v402 = vpop.f32.mrb[0].mxu0
  %v403 = vadd.f32 0.0, %v402
  %v404 = vpop.f32.mrb[0].mxu0
  %405 = vmatprep.mubr.bf16.mxu0 %v190
  %406 = vmatmul.mubr.bf16.gmra.mrb[0].mxu0 %v189
  %v407 = vpop.f32.mrb[0].mxu0
  %v408 = vadd.f32 0.0, %v407
  %v409 = vpop.f32.mrb[0].mxu0
  %v410 = vpop.f32.mrb[0].mxu0
  %v411 = vadd.f32 0.0, %v410
  %v412 = vpop.f32.mrb[0].mxu0
  %413 = vmatprep.mubr.bf16.mxu0 %v192
  %414 = vmatmul.mubr.bf16.gmra.mrb[0].mxu0 %v191
  %v415 = vpop.f32.mrb[0].mxu0
  %v416 = vadd.f32 0.0, %v415
  %v417 = vpop.f32.mrb[0].mxu0
  %v418 = vpop.f32.mrb[0].mxu0
  %v419 = vadd.f32 0.0, %v418
  %v420 = vpop.f32.mrb[0].mxu0
  %421 = vmatprep.mubr.bf16.mxu0 %v194
  %422 = vmatmul.mubr.bf16.gmra.mrb[0].mxu0 %v193
  %v423 = vpop.f32.mrb[0].mxu0
  %v424 = vadd.f32 0.0, %v423
  %v425 = vpop.f32.mrb[0].mxu0
  %v426 = vpop.f32.mrb[0].mxu0
  %v427 = vadd.f32 0.0, %v426
  %v428 = vpop.f32.mrb[0].mxu0
  %429 = vmatprep.mubr.bf16.mxu0 %v196
  %430 = vmatmul.mubr.bf16.gmra.mrb[0].mxu0 %v195
  %v431 = vpop.f32.mrb[0].mxu0
  %v432 = vadd.f32 0.0, %v431
  %v433 = vpop.f32.mrb[0].mxu0
  %v434 = vpop.f32.mrb[0].mxu0
  %v435 = vadd.f32 0.0, %v434
  %v436 = vpop.f32.mrb[0].mxu0
  %437 = vmatprep.mubr.bf16.mxu0 %v198
  %438 = vmatmul.mubr.bf16.gmra.mrb[0].mxu0 %v197
  %v439 = vpop.f32.mrb[0].mxu0
  %v440 = vadd.f32 0.0, %v439
  %v441 = vpop.f32.mrb[0].mxu0
  %v442 = vpop.f32.mrb[0].mxu0
  %v443 = vadd.f32 0.0, %v442
  %v444 = vpop.f32.mrb[0].mxu0
  %445 = vmatprep.mubr.bf16.mxu0 %v200
  %446 = vmatmul.mubr.bf16.gmra.mrb[0].mxu0 %v199
  %v447 = vpop.f32.mrb[0].mxu0
  %v448 = vadd.f32 0.0, %v447
  %v449 = vpop.f32.mrb[0].mxu0
  %v450 = vpop.f32.mrb[0].mxu0
  %v451 = vadd.f32 0.0, %v450
  %v452 = vpop.f32.mrb[0].mxu0
  %453 = vmatprep.mubr.bf16.mxu0 %v202
  %454 = vmatmul.mubr.bf16.gmra.mrb[0].mxu0 %v201
  %v455 = vpop.f32.mrb[0].mxu0
  %v456 = vadd.f32 0.0, %v455
  %v457 = vpop.f32.mrb[0].mxu0
  %v458 = vpop.f32.mrb[0].mxu0
  %v459 = vadd.f32 0.0, %v458
  %v460 = vpop.f32.mrb[0].mxu0
  %461 = vmatprep.mubr.bf16.mxu0 %v204
  %462 = vmatmul.mubr.bf16.gmra.mrb[0].mxu0 %v203
  %v463 = vpop.f32.mrb[0].mxu0
  %v464 = vadd.f32 0.0, %v463
  %v465 = vpop.f32.mrb[0].mxu0
  %v466 = vpop.f32.mrb[0].mxu0
  %v467 = vadd.f32 0.0, %v466
  %v468 = vpop.f32.mrb[0].mxu0
  %469 = vmatprep.mubr.bf16.mxu0 %v206
  %470 = vmatmul.mubr.bf16.gmra.mrb[0].mxu0 %v205
  %v471 = vpop.f32.mrb[0].mxu0
  %v472 = vadd.f32 0.0, %v471
  %v473 = vpop.f32.mrb[0].mxu0
  %v474 = vpop.f32.mrb[0].mxu0
  %v475 = vadd.f32 0.0, %v474
  %v476 = vpop.f32.mrb[0].mxu0
  %477 = vmatprep.mubr.bf16.mxu0 %v208
  %478 = vmatmul.mubr.bf16.gmra.mrb[0].mxu0 %v207
  %v479 = vpop.f32.mrb[0].mxu0
  %v480 = vadd.f32 0.0, %v479
  %v481 = vpop.f32.mrb[0].mxu0
  %v482 = vpop.f32.mrb[0].mxu0
  %v483 = vadd.f32 0.0, %v482
  %v484 = vpop.f32.mrb[0].mxu0
  %485 = vmatprep.mubr.bf16.mxu0 %v210
  %486 = vmatmul.mubr.bf16.gmra.mrb[0].mxu0 %v209
  %v487 = vpop.f32.mrb[0].mxu0
  %v488 = vadd.f32 0.0, %v487
  %v489 = vpop.f32.mrb[0].mxu0
  %v490 = vpop.f32.mrb[0].mxu0
  %v491 = vadd.f32 0.0, %v490
  %v492 = vpop.f32.mrb[0].mxu0
  %493 = vmatprep.mubr.bf16.mxu0 %v212
  %494 = vmatmul.mubr.bf16.gmra.mrb[0].mxu0 %v211
  %v495 = vpop.f32.mrb[0].mxu0
  %v496 = vadd.f32 0.0, %v495
  %v497 = vpop.f32.mrb[0].mxu0
  %v498 = vpop.f32.mrb[0].mxu0
  %v499 = vadd.f32 0.0, %v498
  %v500 = vpop.f32.mrb[0].mxu0
  %501 = vdwg.mxu0
  %v502 = vpack.c.bf16 %v379, %v376
  %v503 = vpack.c.bf16 %v387, %v384
  %v504 = vpack.c.bf16 %v395, %v392
  %v505 = vpack.c.bf16 %v403, %v400
  %v506 = vpack.c.bf16 %v411, %v408
  %v507 = vpack.c.bf16 %v419, %v416
  %v508 = vpack.c.bf16 %v427, %v424
  %v509 = vpack.c.bf16 %v435, %v432
  %v510 = vpack.c.bf16 %v443, %v440
  %v511 = vpack.c.bf16 %v451, %v448
  %v512 = vpack.c.bf16 %v459, %v456
  %v513 = vpack.c.bf16 %v467, %v464
  %v514 = vpack.c.bf16 %v475, %v472
  %v515 = vpack.c.bf16 %v483, %v480
  %v516 = vpack.c.bf16 %v491, %v488
  %v517 = vpack.c.bf16 %v499, %v496
  %v518 = vld [vmem:[%s2] sm:$0xf]
  %v519 = vld [vmem:[%s2 + $0x4] sm:$0xf]
  %v520 = vld [vmem:[%s2 + $0x8] sm:$0xf]
  %v521 = vld [vmem:[%s2 + $0xc] sm:$0xf]
  %v522 = vld [vmem:[%s2 + $0x10] sm:$0xf]
  %v523 = vld [vmem:[%s2 + $0x14] sm:$0xf]
  %v524 = vld [vmem:[%s2 + $0x18] sm:$0xf]
  %v525 = vld [vmem:[%s2 + $0x1c] sm:$0xf]
  %v526 = vld [vmem:[%s2 + $0x20] sm:$0xf]
  %v527 = vld [vmem:[%s2 + $0x24] sm:$0xf]
  %v528 = vld [vmem:[%s2 + $0x28] sm:$0xf]
  %v529 = vld [vmem:[%s2 + $0x2c] sm:$0xf]
  %v530 = vld [vmem:[%s2 + $0x30] sm:$0xf]
  %v531 = vld [vmem:[%s2 + $0x34] sm:$0xf]
  %v532 = vld [vmem:[%s2 + $0x38] sm:$0xf]
  %v533 = vld [vmem:[%s2 + $0x3c] sm:$0xf]
  %v534 = vld [vmem:[%s3] sm:$0x1]
  %v536 = vlaneseq
  %v537 = vshrl.u32 %v536, 7
  %v538 = vsub.s32 0, %v537
  %v539 = vrot.slane %v534, %v538
  %v557 = vunpack.c.l.b16 %v518
  %v558 = vunpack.c.l.b16 %v519
  %v559 = vunpack.c.l.b16 %v520
  %v560 = vunpack.c.l.b16 %v521
  %v561 = vunpack.c.l.b16 %v522
  %v562 = vunpack.c.l.b16 %v523
  %v563 = vunpack.c.l.b16 %v524
  %v564 = vunpack.c.l.b16 %v525
  %v565 = vunpack.c.l.b16 %v526
  %v566 = vunpack.c.l.b16 %v527
  %v567 = vunpack.c.l.b16 %v528
  %v568 = vunpack.c.l.b16 %v529
  %v569 = vunpack.c.l.b16 %v530
  %v570 = vunpack.c.l.b16 %v531
  %v571 = vunpack.c.l.b16 %v532
  %v572 = vunpack.c.l.b16 %v533
  %v573 = vpack.c.b16 %v558, %v557
  %v574 = vpack.c.b16 %v560, %v559
  %v575 = vpack.c.b16 %v562, %v561
  %v576 = vpack.c.b16 %v564, %v563
  %v577 = vpack.c.b16 %v566, %v565
  %v578 = vpack.c.b16 %v568, %v567
  %v579 = vpack.c.b16 %v570, %v569
  %v580 = vpack.c.b16 %v572, %v571
  %589 = vmatprep.subr.bf16.mxu0 0
  %590 = vmatpush1.bf16.msra.mxu0 %v573
  %591 = vmatprep.subr.bf16.mxu0 0
  %592 = vmatpush1.bf16.msra.mxu0 %v574
  %593 = vmatprep.subr.bf16.mxu0 0
  %594 = vmatpush1.bf16.msra.mxu0 %v575
  %595 = vmatprep.subr.bf16.mxu0 0
  %596 = vmatpush1.bf16.msra.mxu0 %v576
  %597 = vmatprep.subr.bf16.mxu0 0
  %598 = vmatpush1.bf16.msra.mxu0 %v577
  %599 = vmatprep.subr.bf16.mxu0 0
  %600 = vmatpush1.bf16.msra.mxu0 %v578
  %601 = vmatprep.subr.bf16.mxu0 0
  %602 = vmatpush1.bf16.msra.mxu0 %v579
  %603 = vmatprep.subr.bf16.mxu0 0
  %604 = vmatpush1.bf16.msra.mxu0 %v580
  %605 = vmatprep.subr.bf16.mxu0 0
  %606 = vmatpush1.bf16.msra.mxu0 0
  %607 = vmatprep.subr.bf16.mxu0 0
  %608 = vmatpush1.bf16.msra.mxu0 0
  %609 = vmatprep.subr.bf16.mxu0 0
  %610 = vmatpush1.bf16.msra.mxu0 0
  %611 = vmatprep.subr.bf16.mxu0 0
  %612 = vmatpush1.bf16.msra.mxu0 0
  %613 = vmatprep.subr.bf16.mxu0 0
  %614 = vmatpush1.bf16.msra.mxu0 0
  %615 = vmatprep.subr.bf16.mxu0 0
  %616 = vmatpush1.bf16.msra.mxu0 0
  %617 = vmatprep.subr.bf16.mxu0 0
  %618 = vmatpush1.bf16.msra.mxu0 0
  %619 = vmatprep.subr.bf16.mxu0 0
  %620 = vmatpush1.bf16.msra.mxu0 0
  %621 = vmatprep.mubr.bf16.mxu0 0
  %622 = vmatmul.mubr.bf16.gmra.mrb[0].mxu0 %v502
  %v623 = vpop.f32.mrb[0].mxu0
  %v624 = vadd.f32 %v539, %v623
  %v625 = vpop.f32.mrb[0].mxu0
  %v626 = vpop.f32.mrb[0].mxu0
  %v627 = vadd.f32 %v539, %v626
  %v628 = vpop.f32.mrb[0].mxu0
  %629 = vmatprep.mubr.bf16.mxu0 0
  %630 = vmatmul.mubr.bf16.gmra.mrb[0].mxu0 %v503
  %v631 = vpop.f32.mrb[0].mxu0
  %v632 = vadd.f32 %v539, %v631
  %v633 = vpop.f32.mrb[0].mxu0
  %v634 = vpop.f32.mrb[0].mxu0
  %v635 = vadd.f32 %v539, %v634
  %v636 = vpop.f32.mrb[0].mxu0
  %637 = vmatprep.mubr.bf16.mxu0 0
  %638 = vmatmul.mubr.bf16.gmra.mrb[0].mxu0 %v504
  %v639 = vpop.f32.mrb[0].mxu0
  %v640 = vadd.f32 %v539, %v639
  %v641 = vpop.f32.mrb[0].mxu0
  %v642 = vpop.f32.mrb[0].mxu0
  %v643 = vadd.f32 %v539, %v642
  %v644 = vpop.f32.mrb[0].mxu0
  %645 = vmatprep.mubr.bf16.mxu0 0
  %646 = vmatmul.mubr.bf16.gmra.mrb[0].mxu0 %v505
  %v647 = vpop.f32.mrb[0].mxu0
  %v648 = vadd.f32 %v539, %v647
  %v649 = vpop.f32.mrb[0].mxu0
  %v650 = vpop.f32.mrb[0].mxu0
  %v651 = vadd.f32 %v539, %v650
  %v652 = vpop.f32.mrb[0].mxu0
  %653 = vmatprep.mubr.bf16.mxu0 0
  %654 = vmatmul.mubr.bf16.gmra.mrb[0].mxu0 %v506
  %v655 = vpop.f32.mrb[0].mxu0
  %v656 = vadd.f32 %v539, %v655
  %v657 = vpop.f32.mrb[0].mxu0
  %v658 = vpop.f32.mrb[0].mxu0
  %v659 = vadd.f32 %v539, %v658
  %v660 = vpop.f32.mrb[0].mxu0
  %661 = vmatprep.mubr.bf16.mxu0 0
  %662 = vmatmul.mubr.bf16.gmra.mrb[0].mxu0 %v507
  %v663 = vpop.f32.mrb[0].mxu0
  %v664 = vadd.f32 %v539, %v663
  %v665 = vpop.f32.mrb[0].mxu0
  %v666 = vpop.f32.mrb[0].mxu0
  %v667 = vadd.f32 %v539, %v666
  %v668 = vpop.f32.mrb[0].mxu0
  %669 = vmatprep.mubr.bf16.mxu0 0
  %670 = vmatmul.mubr.bf16.gmra.mrb[0].mxu0 %v508
  %v671 = vpop.f32.mrb[0].mxu0
  %v672 = vadd.f32 %v539, %v671
  %v673 = vpop.f32.mrb[0].mxu0
  %v674 = vpop.f32.mrb[0].mxu0
  %v675 = vadd.f32 %v539, %v674
  %v676 = vpop.f32.mrb[0].mxu0
  %677 = vmatprep.mubr.bf16.mxu0 0
  %678 = vmatmul.mubr.bf16.gmra.mrb[0].mxu0 %v509
  %v679 = vpop.f32.mrb[0].mxu0
  %v680 = vadd.f32 %v539, %v679
  %v681 = vpop.f32.mrb[0].mxu0
  %v682 = vpop.f32.mrb[0].mxu0
  %v683 = vadd.f32 %v539, %v682
  %v684 = vpop.f32.mrb[0].mxu0
  %685 = vmatprep.mubr.bf16.mxu0 0
  %686 = vmatmul.mubr.bf16.gmra.mrb[0].mxu0 %v510
  %v687 = vpop.f32.mrb[0].mxu0
  %v688 = vadd.f32 %v539, %v687
  %v689 = vpop.f32.mrb[0].mxu0
  %v690 = vpop.f32.mrb[0].mxu0
  %v691 = vadd.f32 %v539, %v690
  %v692 = vpop.f32.mrb[0].mxu0
  %693 = vmatprep.mubr.bf16.mxu0 0
  %694 = vmatmul.mubr.bf16.gmra.mrb[0].mxu0 %v511
  %v695 = vpop.f32.mrb[0].mxu0
  %v696 = vadd.f32 %v539, %v695
  %v697 = vpop.f32.mrb[0].mxu0
  %v698 = vpop.f32.mrb[0].mxu0
  %v699 = vadd.f32 %v539, %v698
  %v700 = vpop.f32.mrb[0].mxu0
  %701 = vmatprep.mubr.bf16.mxu0 0
  %702 = vmatmul.mubr.bf16.gmra.mrb[0].mxu0 %v512
  %v703 = vpop.f32.mrb[0].mxu0
  %v704 = vadd.f32 %v539, %v703
  %v705 = vpop.f32.mrb[0].mxu0
  %v706 = vpop.f32.mrb[0].mxu0
  %v707 = vadd.f32 %v539, %v706
  %v708 = vpop.f32.mrb[0].mxu0
  %709 = vmatprep.mubr.bf16.mxu0 0
  %710 = vmatmul.mubr.bf16.gmra.mrb[0].mxu0 %v513
  %v711 = vpop.f32.mrb[0].mxu0
  %v712 = vadd.f32 %v539, %v711
  %v713 = vpop.f32.mrb[0].mxu0
  %v714 = vpop.f32.mrb[0].mxu0
  %v715 = vadd.f32 %v539, %v714
  %v716 = vpop.f32.mrb[0].mxu0
  %717 = vmatprep.mubr.bf16.mxu0 0
  %718 = vmatmul.mubr.bf16.gmra.mrb[0].mxu0 %v514
  %v719 = vpop.f32.mrb[0].mxu0
  %v720 = vadd.f32 %v539, %v719
  %v721 = vpop.f32.mrb[0].mxu0
  %v722 = vpop.f32.mrb[0].mxu0
  %v723 = vadd.f32 %v539, %v722
  %v724 = vpop.f32.mrb[0].mxu0
  %725 = vmatprep.mubr.bf16.mxu0 0
  %726 = vmatmul.mubr.bf16.gmra.mrb[0].mxu0 %v515
  %v727 = vpop.f32.mrb[0].mxu0
  %v728 = vadd.f32 %v539, %v727
  %v729 = vpop.f32.mrb[0].mxu0
  %v730 = vpop.f32.mrb[0].mxu0
  %v731 = vadd.f32 %v539, %v730
  %v732 = vpop.f32.mrb[0].mxu0
  %733 = vmatprep.mubr.bf16.mxu0 0
  %734 = vmatmul.mubr.bf16.gmra.mrb[0].mxu0 %v516
  %v735 = vpop.f32.mrb[0].mxu0
  %v736 = vadd.f32 %v539, %v735
  %v737 = vpop.f32.mrb[0].mxu0
  %v738 = vpop.f32.mrb[0].mxu0
  %v739 = vadd.f32 %v539, %v738
  %v740 = vpop.f32.mrb[0].mxu0
  %741 = vmatprep.mubr.bf16.mxu0 0
  %742 = vmatmul.mubr.bf16.gmra.mrb[0].mxu0 %v517
  %v743 = vpop.f32.mrb[0].mxu0
  %v744 = vadd.f32 %v539, %v743
  %v745 = vpop.f32.mrb[0].mxu0
  %v746 = vpop.f32.mrb[0].mxu0
  %v747 = vadd.f32 %v539, %v746
  %v748 = vpop.f32.mrb[0].mxu0
  %749 = vdwg.mxu0
  %v750 = vmax.f32 %v624, 0.0
  %v751 = vmax.f32 %v627, 0.0
  %v752 = vmax.f32 %v632, 0.0
  %v753 = vmax.f32 %v635, 0.0
  %v754 = vmax.f32 %v640, 0.0
  %v755 = vmax.f32 %v643, 0.0
  %v756 = vmax.f32 %v648, 0.0
  %v757 = vmax.f32 %v651, 0.0
  %v758 = vmax.f32 %v656, 0.0
  %v759 = vmax.f32 %v659, 0.0
  %v760 = vmax.f32 %v664, 0.0
  %v761 = vmax.f32 %v667, 0.0
  %v762 = vmax.f32 %v672, 0.0
  %v763 = vmax.f32 %v675, 0.0
  %v764 = vmax.f32 %v680, 0.0
  %v765 = vmax.f32 %v683, 0.0
  %v766 = vmax.f32 %v688, 0.0
  %v767 = vmax.f32 %v691, 0.0
  %v768 = vmax.f32 %v696, 0.0
  %v769 = vmax.f32 %v699, 0.0
  %v770 = vmax.f32 %v704, 0.0
  %v771 = vmax.f32 %v707, 0.0
  %v772 = vmax.f32 %v712, 0.0
  %v773 = vmax.f32 %v715, 0.0
  %v774 = vmax.f32 %v720, 0.0
  %v775 = vmax.f32 %v723, 0.0
  %v776 = vmax.f32 %v728, 0.0
  %v777 = vmax.f32 %v731, 0.0
  %v778 = vmax.f32 %v736, 0.0
  %v779 = vmax.f32 %v739, 0.0
  %v780 = vmax.f32 %v744, 0.0
  %v781 = vmax.f32 %v747, 0.0
  %v782 = vpack.c.bf16 %v751, %v750
  %v783 = vpack.c.bf16 %v753, %v752
  %v784 = vpack.c.bf16 %v755, %v754
  %v785 = vpack.c.bf16 %v757, %v756
  %v786 = vpack.c.bf16 %v759, %v758
  %v787 = vpack.c.bf16 %v761, %v760
  %v788 = vpack.c.bf16 %v763, %v762
  %v789 = vpack.c.bf16 %v765, %v764
  %v790 = vpack.c.bf16 %v767, %v766
  %v791 = vpack.c.bf16 %v769, %v768
  %v792 = vpack.c.bf16 %v771, %v770
  %v793 = vpack.c.bf16 %v773, %v772
  %v794 = vpack.c.bf16 %v775, %v774
  %v795 = vpack.c.bf16 %v777, %v776
  %v796 = vpack.c.bf16 %v779, %v778
  %v797 = vpack.c.bf16 %v781, %v780
  %798 = vmatprep.subr.bf16.mxu0 0
  %799 = vmatpush1.bf16.msra.mxu0 %v782
  %800 = vmatprep.subr.bf16.mxu0 0
  %801 = vmatpush1.bf16.msra.mxu0 %v783
  %802 = vmatprep.subr.bf16.mxu0 0
  %803 = vmatpush1.bf16.msra.mxu0 %v784
  %804 = vmatprep.subr.bf16.mxu0 0
  %805 = vmatpush1.bf16.msra.mxu0 %v785
  %806 = vmatprep.subr.bf16.mxu0 0
  %807 = vmatpush1.bf16.msra.mxu0 %v786
  %808 = vmatprep.subr.bf16.mxu0 0
  %809 = vmatpush1.bf16.msra.mxu0 %v787
  %810 = vmatprep.subr.bf16.mxu0 0
  %811 = vmatpush1.bf16.msra.mxu0 %v788
  %812 = vmatprep.subr.bf16.mxu0 0
  %813 = vmatpush1.bf16.msra.mxu0 %v789
  %814 = vmatprep.subr.bf16.mxu0 0
  %815 = vmatpush1.bf16.msra.mxu0 %v790
  %816 = vmatprep.subr.bf16.mxu0 0
  %817 = vmatpush1.bf16.msra.mxu0 %v791
  %818 = vmatprep.subr.bf16.mxu0 0
  %819 = vmatpush1.bf16.msra.mxu0 %v792
  %820 = vmatprep.subr.bf16.mxu0 0
  %821 = vmatpush1.bf16.msra.mxu0 %v793
  %822 = vmatprep.subr.bf16.mxu0 0
  %823 = vmatpush1.bf16.msra.mxu0 %v794
  %824 = vmatprep.subr.bf16.mxu0 0
  %825 = vmatpush1.bf16.msra.mxu0 %v795
  %826 = vmatprep.subr.bf16.mxu0 0
  %827 = vmatpush1.bf16.msra.mxu0 %v796
  %828 = vmatprep.subr.bf16.mxu0 0
  %829 = vmatpush1.bf16.msra.mxu0 %v797
  %830 = vmatprep.mubr.bf16.mxu0 %v182
  %831 = vmatmul.mubr.bf16.gmra.mrb[0].mxu0 %v181
  %v832 = vpop.f32.mrb[0].mxu0
  %v833 = vadd.f32 0.0, %v832
  %v834 = vpop.f32.mrb[0].mxu0
  %v835 = vpop.f32.mrb[0].mxu0
  %v836 = vadd.f32 0.0, %v835
  %v837 = vpop.f32.mrb[0].mxu0
  %838 = vmatprep.mubr.bf16.mxu0 %v184
  %839 = vmatmul.mubr.bf16.gmra.mrb[0].mxu0 %v183
  %v840 = vpop.f32.mrb[0].mxu0
  %v841 = vadd.f32 0.0, %v840
  %v842 = vpop.f32.mrb[0].mxu0
  %v843 = vpop.f32.mrb[0].mxu0
  %v844 = vadd.f32 0.0, %v843
  %v845 = vpop.f32.mrb[0].mxu0
  %846 = vmatprep.mubr.bf16.mxu0 %v186
  %847 = vmatmul.mubr.bf16.gmra.mrb[0].mxu0 %v185
  %v848 = vpop.f32.mrb[0].mxu0
  %v849 = vadd.f32 0.0, %v848
  %v850 = vpop.f32.mrb[0].mxu0
  %v851 = vpop.f32.mrb[0].mxu0
  %v852 = vadd.f32 0.0, %v851
  %v853 = vpop.f32.mrb[0].mxu0
  %854 = vmatprep.mubr.bf16.mxu0 %v188
  %855 = vmatmul.mubr.bf16.gmra.mrb[0].mxu0 %v187
  %v856 = vpop.f32.mrb[0].mxu0
  %v857 = vadd.f32 0.0, %v856
  %v858 = vpop.f32.mrb[0].mxu0
  %v859 = vpop.f32.mrb[0].mxu0
  %v860 = vadd.f32 0.0, %v859
  %v861 = vpop.f32.mrb[0].mxu0
  %862 = vmatprep.mubr.bf16.mxu0 %v190
  %863 = vmatmul.mubr.bf16.gmra.mrb[0].mxu0 %v189
  %v864 = vpop.f32.mrb[0].mxu0
  %v865 = vadd.f32 0.0, %v864
  %v866 = vpop.f32.mrb[0].mxu0
  %v867 = vpop.f32.mrb[0].mxu0
  %v868 = vadd.f32 0.0, %v867
  %v869 = vpop.f32.mrb[0].mxu0
  %870 = vmatprep.mubr.bf16.mxu0 %v192
  %871 = vmatmul.mubr.bf16.gmra.mrb[0].mxu0 %v191
  %v872 = vpop.f32.mrb[0].mxu0
  %v873 = vadd.f32 0.0, %v872
  %v874 = vpop.f32.mrb[0].mxu0
  %v875 = vpop.f32.mrb[0].mxu0
  %v876 = vadd.f32 0.0, %v875
  %v877 = vpop.f32.mrb[0].mxu0
  %878 = vmatprep.mubr.bf16.mxu0 %v194
  %879 = vmatmul.mubr.bf16.gmra.mrb[0].mxu0 %v193
  %v880 = vpop.f32.mrb[0].mxu0
  %v881 = vadd.f32 0.0, %v880
  %v882 = vpop.f32.mrb[0].mxu0
  %v883 = vpop.f32.mrb[0].mxu0
  %v884 = vadd.f32 0.0, %v883
  %v885 = vpop.f32.mrb[0].mxu0
  %886 = vmatprep.mubr.bf16.mxu0 %v196
  %887 = vmatmul.mubr.bf16.gmra.mrb[0].mxu0 %v195
  %v888 = vpop.f32.mrb[0].mxu0
  %v889 = vadd.f32 0.0, %v888
  %v890 = vpop.f32.mrb[0].mxu0
  %v891 = vpop.f32.mrb[0].mxu0
  %v892 = vadd.f32 0.0, %v891
  %v893 = vpop.f32.mrb[0].mxu0
  %894 = vmatprep.mubr.bf16.mxu0 %v198
  %895 = vmatmul.mubr.bf16.gmra.mrb[0].mxu0 %v197
  %v896 = vpop.f32.mrb[0].mxu0
  %v897 = vadd.f32 0.0, %v896
  %v898 = vpop.f32.mrb[0].mxu0
  %v899 = vpop.f32.mrb[0].mxu0
  %v900 = vadd.f32 0.0, %v899
  %v901 = vpop.f32.mrb[0].mxu0
  %902 = vmatprep.mubr.bf16.mxu0 %v200
  %903 = vmatmul.mubr.bf16.gmra.mrb[0].mxu0 %v199
  %v904 = vpop.f32.mrb[0].mxu0
  %v905 = vadd.f32 0.0, %v904
  %v906 = vpop.f32.mrb[0].mxu0
  %v907 = vpop.f32.mrb[0].mxu0
  %v908 = vadd.f32 0.0, %v907
  %v909 = vpop.f32.mrb[0].mxu0
  %910 = vmatprep.mubr.bf16.mxu0 %v202
  %911 = vmatmul.mubr.bf16.gmra.mrb[0].mxu0 %v201
  %v912 = vpop.f32.mrb[0].mxu0
  %v913 = vadd.f32 0.0, %v912
  %v914 = vpop.f32.mrb[0].mxu0
  %v915 = vpop.f32.mrb[0].mxu0
  %v916 = vadd.f32 0.0, %v915
  %v917 = vpop.f32.mrb[0].mxu0
  %918 = vmatprep.mubr.bf16.mxu0 %v204
  %919 = vmatmul.mubr.bf16.gmra.mrb[0].mxu0 %v203
  %v920 = vpop.f32.mrb[0].mxu0
  %v921 = vadd.f32 0.0, %v920
  %v922 = vpop.f32.mrb[0].mxu0
  %v923 = vpop.f32.mrb[0].mxu0
  %v924 = vadd.f32 0.0, %v923
  %v925 = vpop.f32.mrb[0].mxu0
  %926 = vmatprep.mubr.bf16.mxu0 %v206
  %927 = vmatmul.mubr.bf16.gmra.mrb[0].mxu0 %v205
  %v928 = vpop.f32.mrb[0].mxu0
  %v929 = vadd.f32 0.0, %v928
  %v930 = vpop.f32.mrb[0].mxu0
  %v931 = vpop.f32.mrb[0].mxu0
  %v932 = vadd.f32 0.0, %v931
  %v933 = vpop.f32.mrb[0].mxu0
  %934 = vmatprep.mubr.bf16.mxu0 %v208
  %935 = vmatmul.mubr.bf16.gmra.mrb[0].mxu0 %v207
  %v936 = vpop.f32.mrb[0].mxu0
  %v937 = vadd.f32 0.0, %v936
  %v938 = vpop.f32.mrb[0].mxu0
  %v939 = vpop.f32.mrb[0].mxu0
  %v940 = vadd.f32 0.0, %v939
  %v941 = vpop.f32.mrb[0].mxu0
  %942 = vmatprep.mubr.bf16.mxu0 %v210
  %943 = vmatmul.mubr.bf16.gmra.mrb[0].mxu0 %v209
  %v944 = vpop.f32.mrb[0].mxu0
  %v945 = vadd.f32 0.0, %v944
  %v946 = vpop.f32.mrb[0].mxu0
  %v947 = vpop.f32.mrb[0].mxu0
  %v948 = vadd.f32 0.0, %v947
  %v949 = vpop.f32.mrb[0].mxu0
  %950 = vmatprep.mubr.bf16.mxu0 %v212
  %951 = vmatmul.mubr.bf16.gmra.mrb[0].mxu0 %v211
  %v952 = vpop.f32.mrb[0].mxu0
  %v953 = vadd.f32 0.0, %v952
  %v954 = vpop.f32.mrb[0].mxu0
  %v955 = vpop.f32.mrb[0].mxu0
  %v956 = vadd.f32 0.0, %v955
  %v957 = vpop.f32.mrb[0].mxu0
  %958 = vdwg.mxu0
  %v959 = vpack.c.bf16 %v836, %v833
  %v960 = vpack.c.bf16 %v844, %v841
  %v961 = vpack.c.bf16 %v852, %v849
  %v962 = vpack.c.bf16 %v860, %v857
  %v963 = vpack.c.bf16 %v868, %v865
  %v964 = vpack.c.bf16 %v876, %v873
  %v965 = vpack.c.bf16 %v884, %v881
  %v966 = vpack.c.bf16 %v892, %v889
  %v967 = vpack.c.bf16 %v900, %v897
  %v968 = vpack.c.bf16 %v908, %v905
  %v969 = vpack.c.bf16 %v916, %v913
  %v970 = vpack.c.bf16 %v924, %v921
  %v971 = vpack.c.bf16 %v932, %v929
  %v972 = vpack.c.bf16 %v940, %v937
  %v973 = vpack.c.bf16 %v948, %v945
  %v974 = vpack.c.bf16 %v956, %v953
  %s975 = scalar_lea.vmem %s2, 64
  %v976 = vld [vmem:[%s975] sm:$0xf]
  %v977 = vld [vmem:[%s975 + $0x4] sm:$0xf]
  %v978 = vld [vmem:[%s975 + $0x8] sm:$0xf]
  %v979 = vld [vmem:[%s975 + $0xc] sm:$0xf]
  %v980 = vld [vmem:[%s975 + $0x10] sm:$0xf]
  %v981 = vld [vmem:[%s975 + $0x14] sm:$0xf]
  %v982 = vld [vmem:[%s975 + $0x18] sm:$0xf]
  %v983 = vld [vmem:[%s975 + $0x1c] sm:$0xf]
  %v984 = vld [vmem:[%s975 + $0x20] sm:$0xf]
  %v985 = vld [vmem:[%s975 + $0x24] sm:$0xf]
  %v986 = vld [vmem:[%s975 + $0x28] sm:$0xf]
  %v987 = vld [vmem:[%s975 + $0x2c] sm:$0xf]
  %v988 = vld [vmem:[%s975 + $0x30] sm:$0xf]
  %v989 = vld [vmem:[%s975 + $0x34] sm:$0xf]
  %v990 = vld [vmem:[%s975 + $0x38] sm:$0xf]
  %v991 = vld [vmem:[%s975 + $0x3c] sm:$0xf]
  %s992 = scalar_lea.vmem %s3, 1
  %v993 = vld [vmem:[%s992] sm:$0x1]
  %v995 = vlaneseq
  %v996 = vshrl.u32 %v995, 7
  %v997 = vsub.s32 0, %v996
  %v998 = vrot.slane %v993, %v997
  %v1016 = vunpack.c.l.b16 %v976
  %v1017 = vunpack.c.l.b16 %v977
  %v1018 = vunpack.c.l.b16 %v978
  %v1019 = vunpack.c.l.b16 %v979
  %v1020 = vunpack.c.l.b16 %v980
  %v1021 = vunpack.c.l.b16 %v981
  %v1022 = vunpack.c.l.b16 %v982
  %v1023 = vunpack.c.l.b16 %v983
  %v1024 = vunpack.c.l.b16 %v984
  %v1025 = vunpack.c.l.b16 %v985
  %v1026 = vunpack.c.l.b16 %v986
  %v1027 = vunpack.c.l.b16 %v987
  %v1028 = vunpack.c.l.b16 %v988
  %v1029 = vunpack.c.l.b16 %v989
  %v1030 = vunpack.c.l.b16 %v990
  %v1031 = vunpack.c.l.b16 %v991
  %v1032 = vpack.c.b16 %v1017, %v1016
  %v1033 = vpack.c.b16 %v1019, %v1018
  %v1034 = vpack.c.b16 %v1021, %v1020
  %v1035 = vpack.c.b16 %v1023, %v1022
  %v1036 = vpack.c.b16 %v1025, %v1024
  %v1037 = vpack.c.b16 %v1027, %v1026
  %v1038 = vpack.c.b16 %v1029, %v1028
  %v1039 = vpack.c.b16 %v1031, %v1030
  %1048 = vmatprep.subr.bf16.mxu0 0
  %1049 = vmatpush1.bf16.msra.mxu0 %v1032
  %1050 = vmatprep.subr.bf16.mxu0 0
  %1051 = vmatpush1.bf16.msra.mxu0 %v1033
  %1052 = vmatprep.subr.bf16.mxu0 0
  %1053 = vmatpush1.bf16.msra.mxu0 %v1034
  %1054 = vmatprep.subr.bf16.mxu0 0
  %1055 = vmatpush1.bf16.msra.mxu0 %v1035
  %1056 = vmatprep.subr.bf16.mxu0 0
  %1057 = vmatpush1.bf16.msra.mxu0 %v1036
  %1058 = vmatprep.subr.bf16.mxu0 0
  %1059 = vmatpush1.bf16.msra.mxu0 %v1037
  %1060 = vmatprep.subr.bf16.mxu0 0
  %1061 = vmatpush1.bf16.msra.mxu0 %v1038
  %1062 = vmatprep.subr.bf16.mxu0 0
  %1063 = vmatpush1.bf16.msra.mxu0 %v1039
  %1064 = vmatprep.subr.bf16.mxu0 0
  %1065 = vmatpush1.bf16.msra.mxu0 0
  %1066 = vmatprep.subr.bf16.mxu0 0
  %1067 = vmatpush1.bf16.msra.mxu0 0
  %1068 = vmatprep.subr.bf16.mxu0 0
  %1069 = vmatpush1.bf16.msra.mxu0 0
  %1070 = vmatprep.subr.bf16.mxu0 0
  %1071 = vmatpush1.bf16.msra.mxu0 0
  %1072 = vmatprep.subr.bf16.mxu0 0
  %1073 = vmatpush1.bf16.msra.mxu0 0
  %1074 = vmatprep.subr.bf16.mxu0 0
  %1075 = vmatpush1.bf16.msra.mxu0 0
  %1076 = vmatprep.subr.bf16.mxu0 0
  %1077 = vmatpush1.bf16.msra.mxu0 0
  %1078 = vmatprep.subr.bf16.mxu0 0
  %1079 = vmatpush1.bf16.msra.mxu0 0
  %1080 = vmatprep.mubr.bf16.mxu0 0
  %1081 = vmatmul.mubr.bf16.gmra.mrb[0].mxu0 %v959
  %v1082 = vpop.f32.mrb[0].mxu0
  %v1083 = vadd.f32 %v998, %v1082
  %v1084 = vpop.f32.mrb[0].mxu0
  %v1085 = vpop.f32.mrb[0].mxu0
  %v1086 = vadd.f32 %v998, %v1085
  %v1087 = vpop.f32.mrb[0].mxu0
  %1088 = vmatprep.mubr.bf16.mxu0 0
  %1089 = vmatmul.mubr.bf16.gmra.mrb[0].mxu0 %v960
  %v1090 = vpop.f32.mrb[0].mxu0
  %v1091 = vadd.f32 %v998, %v1090
  %v1092 = vpop.f32.mrb[0].mxu0
  %v1093 = vpop.f32.mrb[0].mxu0
  %v1094 = vadd.f32 %v998, %v1093
  %v1095 = vpop.f32.mrb[0].mxu0
  %1096 = vmatprep.mubr.bf16.mxu0 0
  %1097 = vmatmul.mubr.bf16.gmra.mrb[0].mxu0 %v961
  %v1098 = vpop.f32.mrb[0].mxu0
  %v1099 = vadd.f32 %v998, %v1098
  %v1100 = vpop.f32.mrb[0].mxu0
  %v1101 = vpop.f32.mrb[0].mxu0
  %v1102 = vadd.f32 %v998, %v1101
  %v1103 = vpop.f32.mrb[0].mxu0
  %1104 = vmatprep.mubr.bf16.mxu0 0
  %1105 = vmatmul.mubr.bf16.gmra.mrb[0].mxu0 %v962
  %v1106 = vpop.f32.mrb[0].mxu0
  %v1107 = vadd.f32 %v998, %v1106
  %v1108 = vpop.f32.mrb[0].mxu0
  %v1109 = vpop.f32.mrb[0].mxu0
  %v1110 = vadd.f32 %v998, %v1109
  %v1111 = vpop.f32.mrb[0].mxu0
  %1112 = vmatprep.mubr.bf16.mxu0 0
  %1113 = vmatmul.mubr.bf16.gmra.mrb[0].mxu0 %v963
  %v1114 = vpop.f32.mrb[0].mxu0
  %v1115 = vadd.f32 %v998, %v1114
  %v1116 = vpop.f32.mrb[0].mxu0
  %v1117 = vpop.f32.mrb[0].mxu0
  %v1118 = vadd.f32 %v998, %v1117
  %v1119 = vpop.f32.mrb[0].mxu0
  %1120 = vmatprep.mubr.bf16.mxu0 0
  %1121 = vmatmul.mubr.bf16.gmra.mrb[0].mxu0 %v964
  %v1122 = vpop.f32.mrb[0].mxu0
  %v1123 = vadd.f32 %v998, %v1122
  %v1124 = vpop.f32.mrb[0].mxu0
  %v1125 = vpop.f32.mrb[0].mxu0
  %v1126 = vadd.f32 %v998, %v1125
  %v1127 = vpop.f32.mrb[0].mxu0
  %1128 = vmatprep.mubr.bf16.mxu0 0
  %1129 = vmatmul.mubr.bf16.gmra.mrb[0].mxu0 %v965
  %v1130 = vpop.f32.mrb[0].mxu0
  %v1131 = vadd.f32 %v998, %v1130
  %v1132 = vpop.f32.mrb[0].mxu0
  %v1133 = vpop.f32.mrb[0].mxu0
  %v1134 = vadd.f32 %v998, %v1133
  %v1135 = vpop.f32.mrb[0].mxu0
  %1136 = vmatprep.mubr.bf16.mxu0 0
  %1137 = vmatmul.mubr.bf16.gmra.mrb[0].mxu0 %v966
  %v1138 = vpop.f32.mrb[0].mxu0
  %v1139 = vadd.f32 %v998, %v1138
  %v1140 = vpop.f32.mrb[0].mxu0
  %v1141 = vpop.f32.mrb[0].mxu0
  %v1142 = vadd.f32 %v998, %v1141
  %v1143 = vpop.f32.mrb[0].mxu0
  %1144 = vmatprep.mubr.bf16.mxu0 0
  %1145 = vmatmul.mubr.bf16.gmra.mrb[0].mxu0 %v967
  %v1146 = vpop.f32.mrb[0].mxu0
  %v1147 = vadd.f32 %v998, %v1146
  %v1148 = vpop.f32.mrb[0].mxu0
  %v1149 = vpop.f32.mrb[0].mxu0
  %v1150 = vadd.f32 %v998, %v1149
  %v1151 = vpop.f32.mrb[0].mxu0
  %1152 = vmatprep.mubr.bf16.mxu0 0
  %1153 = vmatmul.mubr.bf16.gmra.mrb[0].mxu0 %v968
  %v1154 = vpop.f32.mrb[0].mxu0
  %v1155 = vadd.f32 %v998, %v1154
  %v1156 = vpop.f32.mrb[0].mxu0
  %v1157 = vpop.f32.mrb[0].mxu0
  %v1158 = vadd.f32 %v998, %v1157
  %v1159 = vpop.f32.mrb[0].mxu0
  %1160 = vmatprep.mubr.bf16.mxu0 0
  %1161 = vmatmul.mubr.bf16.gmra.mrb[0].mxu0 %v969
  %v1162 = vpop.f32.mrb[0].mxu0
  %v1163 = vadd.f32 %v998, %v1162
  %v1164 = vpop.f32.mrb[0].mxu0
  %v1165 = vpop.f32.mrb[0].mxu0
  %v1166 = vadd.f32 %v998, %v1165
  %v1167 = vpop.f32.mrb[0].mxu0
  %1168 = vmatprep.mubr.bf16.mxu0 0
  %1169 = vmatmul.mubr.bf16.gmra.mrb[0].mxu0 %v970
  %v1170 = vpop.f32.mrb[0].mxu0
  %v1171 = vadd.f32 %v998, %v1170
  %v1172 = vpop.f32.mrb[0].mxu0
  %v1173 = vpop.f32.mrb[0].mxu0
  %v1174 = vadd.f32 %v998, %v1173
  %v1175 = vpop.f32.mrb[0].mxu0
  %1176 = vmatprep.mubr.bf16.mxu0 0
  %1177 = vmatmul.mubr.bf16.gmra.mrb[0].mxu0 %v971
  %v1178 = vpop.f32.mrb[0].mxu0
  %v1179 = vadd.f32 %v998, %v1178
  %v1180 = vpop.f32.mrb[0].mxu0
  %v1181 = vpop.f32.mrb[0].mxu0
  %v1182 = vadd.f32 %v998, %v1181
  %v1183 = vpop.f32.mrb[0].mxu0
  %1184 = vmatprep.mubr.bf16.mxu0 0
  %1185 = vmatmul.mubr.bf16.gmra.mrb[0].mxu0 %v972
  %v1186 = vpop.f32.mrb[0].mxu0
  %v1187 = vadd.f32 %v998, %v1186
  %v1188 = vpop.f32.mrb[0].mxu0
  %v1189 = vpop.f32.mrb[0].mxu0
  %v1190 = vadd.f32 %v998, %v1189
  %v1191 = vpop.f32.mrb[0].mxu0
  %1192 = vmatprep.mubr.bf16.mxu0 0
  %1193 = vmatmul.mubr.bf16.gmra.mrb[0].mxu0 %v973
  %v1194 = vpop.f32.mrb[0].mxu0
  %v1195 = vadd.f32 %v998, %v1194
  %v1196 = vpop.f32.mrb[0].mxu0
  %v1197 = vpop.f32.mrb[0].mxu0
  %v1198 = vadd.f32 %v998, %v1197
  %v1199 = vpop.f32.mrb[0].mxu0
  %1200 = vmatprep.mubr.bf16.mxu0 0
  %1201 = vmatmul.mubr.bf16.gmra.mrb[0].mxu0 %v974
  %v1202 = vpop.f32.mrb[0].mxu0
  %v1203 = vadd.f32 %v998, %v1202
  %v1204 = vpop.f32.mrb[0].mxu0
  %v1205 = vpop.f32.mrb[0].mxu0
  %v1206 = vadd.f32 %v998, %v1205
  %v1207 = vpop.f32.mrb[0].mxu0
  %1208 = vdwg.mxu0
  %v1209 = vmax.f32 %v1083, 0.0
  %v1210 = vmax.f32 %v1086, 0.0
  %v1211 = vmax.f32 %v1091, 0.0
  %v1212 = vmax.f32 %v1094, 0.0
  %v1213 = vmax.f32 %v1099, 0.0
  %v1214 = vmax.f32 %v1102, 0.0
  %v1215 = vmax.f32 %v1107, 0.0
  %v1216 = vmax.f32 %v1110, 0.0
  %v1217 = vmax.f32 %v1115, 0.0
  %v1218 = vmax.f32 %v1118, 0.0
  %v1219 = vmax.f32 %v1123, 0.0
  %v1220 = vmax.f32 %v1126, 0.0
  %v1221 = vmax.f32 %v1131, 0.0
  %v1222 = vmax.f32 %v1134, 0.0
  %v1223 = vmax.f32 %v1139, 0.0
  %v1224 = vmax.f32 %v1142, 0.0
  %v1225 = vmax.f32 %v1147, 0.0
  %v1226 = vmax.f32 %v1150, 0.0
  %v1227 = vmax.f32 %v1155, 0.0
  %v1228 = vmax.f32 %v1158, 0.0
  %v1229 = vmax.f32 %v1163, 0.0
  %v1230 = vmax.f32 %v1166, 0.0
  %v1231 = vmax.f32 %v1171, 0.0
  %v1232 = vmax.f32 %v1174, 0.0
  %v1233 = vmax.f32 %v1179, 0.0
  %v1234 = vmax.f32 %v1182, 0.0
  %v1235 = vmax.f32 %v1187, 0.0
  %v1236 = vmax.f32 %v1190, 0.0
  %v1237 = vmax.f32 %v1195, 0.0
  %v1238 = vmax.f32 %v1198, 0.0
  %v1239 = vmax.f32 %v1203, 0.0
  %v1240 = vmax.f32 %v1206, 0.0
  %v1241 = vpack.c.bf16 %v1210, %v1209
  %v1242 = vpack.c.bf16 %v1212, %v1211
  %v1243 = vpack.c.bf16 %v1214, %v1213
  %v1244 = vpack.c.bf16 %v1216, %v1215
  %v1245 = vpack.c.bf16 %v1218, %v1217
  %v1246 = vpack.c.bf16 %v1220, %v1219
  %v1247 = vpack.c.bf16 %v1222, %v1221
  %v1248 = vpack.c.bf16 %v1224, %v1223
  %v1249 = vpack.c.bf16 %v1226, %v1225
  %v1250 = vpack.c.bf16 %v1228, %v1227
  %v1251 = vpack.c.bf16 %v1230, %v1229
  %v1252 = vpack.c.bf16 %v1232, %v1231
  %v1253 = vpack.c.bf16 %v1234, %v1233
  %v1254 = vpack.c.bf16 %v1236, %v1235
  %v1255 = vpack.c.bf16 %v1238, %v1237
  %v1256 = vpack.c.bf16 %v1240, %v1239
  %1257 = vmatprep.subr.bf16.mxu0 0
  %1258 = vmatpush1.bf16.msra.mxu0 %v1241
  %1259 = vmatprep.subr.bf16.mxu0 0
  %1260 = vmatpush1.bf16.msra.mxu0 %v1242
  %1261 = vmatprep.subr.bf16.mxu0 0
  %1262 = vmatpush1.bf16.msra.mxu0 %v1243
  %1263 = vmatprep.subr.bf16.mxu0 0
  %1264 = vmatpush1.bf16.msra.mxu0 %v1244
  %1265 = vmatprep.subr.bf16.mxu0 0
  %1266 = vmatpush1.bf16.msra.mxu0 %v1245
  %1267 = vmatprep.subr.bf16.mxu0 0
  %1268 = vmatpush1.bf16.msra.mxu0 %v1246
  %1269 = vmatprep.subr.bf16.mxu0 0
  %1270 = vmatpush1.bf16.msra.mxu0 %v1247
  %1271 = vmatprep.subr.bf16.mxu0 0
  %1272 = vmatpush1.bf16.msra.mxu0 %v1248
  %1273 = vmatprep.subr.bf16.mxu0 0
  %1274 = vmatpush1.bf16.msra.mxu0 %v1249
  %1275 = vmatprep.subr.bf16.mxu0 0
  %1276 = vmatpush1.bf16.msra.mxu0 %v1250
  %1277 = vmatprep.subr.bf16.mxu0 0
  %1278 = vmatpush1.bf16.msra.mxu0 %v1251
  %1279 = vmatprep.subr.bf16.mxu0 0
  %1280 = vmatpush1.bf16.msra.mxu0 %v1252
  %1281 = vmatprep.subr.bf16.mxu0 0
  %1282 = vmatpush1.bf16.msra.mxu0 %v1253
  %1283 = vmatprep.subr.bf16.mxu0 0
  %1284 = vmatpush1.bf16.msra.mxu0 %v1254
  %1285 = vmatprep.subr.bf16.mxu0 0
  %1286 = vmatpush1.bf16.msra.mxu0 %v1255
  %1287 = vmatprep.subr.bf16.mxu0 0
  %1288 = vmatpush1.bf16.msra.mxu0 %v1256
  %1289 = vmatprep.mubr.bf16.mxu0 %v182
  %1290 = vmatmul.mubr.bf16.gmra.mrb[0].mxu0 %v181
  %v1291 = vpop.f32.mrb[0].mxu0
  %v1292 = vadd.f32 0.0, %v1291
  %v1293 = vpop.f32.mrb[0].mxu0
  %v1294 = vpop.f32.mrb[0].mxu0
  %v1295 = vadd.f32 0.0, %v1294
  %v1296 = vpop.f32.mrb[0].mxu0
  %1297 = vmatprep.mubr.bf16.mxu0 %v184
  %1298 = vmatmul.mubr.bf16.gmra.mrb[0].mxu0 %v183
  %v1299 = vpop.f32.mrb[0].mxu0
  %v1300 = vadd.f32 0.0, %v1299
  %v1301 = vpop.f32.mrb[0].mxu0
  %v1302 = vpop.f32.mrb[0].mxu0
  %v1303 = vadd.f32 0.0, %v1302
  %v1304 = vpop.f32.mrb[0].mxu0
  %1305 = vmatprep.mubr.bf16.mxu0 %v186
  %1306 = vmatmul.mubr.bf16.gmra.mrb[0].mxu0 %v185
  %v1307 = vpop.f32.mrb[0].mxu0
  %v1308 = vadd.f32 0.0, %v1307
  %v1309 = vpop.f32.mrb[0].mxu0
  %v1310 = vpop.f32.mrb[0].mxu0
  %v1311 = vadd.f32 0.0, %v1310
  %v1312 = vpop.f32.mrb[0].mxu0
  %1313 = vmatprep.mubr.bf16.mxu0 %v188
  %1314 = vmatmul.mubr.bf16.gmra.mrb[0].mxu0 %v187
  %v1315 = vpop.f32.mrb[0].mxu0
  %v1316 = vadd.f32 0.0, %v1315
  %v1317 = vpop.f32.mrb[0].mxu0
  %v1318 = vpop.f32.mrb[0].mxu0
  %v1319 = vadd.f32 0.0, %v1318
  %v1320 = vpop.f32.mrb[0].mxu0
  %1321 = vmatprep.mubr.bf16.mxu0 %v190
  %1322 = vmatmul.mubr.bf16.gmra.mrb[0].mxu0 %v189
  %v1323 = vpop.f32.mrb[0].mxu0
  %v1324 = vadd.f32 0.0, %v1323
  %v1325 = vpop.f32.mrb[0].mxu0
  %v1326 = vpop.f32.mrb[0].mxu0
  %v1327 = vadd.f32 0.0, %v1326
  %v1328 = vpop.f32.mrb[0].mxu0
  %1329 = vmatprep.mubr.bf16.mxu0 %v192
  %1330 = vmatmul.mubr.bf16.gmra.mrb[0].mxu0 %v191
  %v1331 = vpop.f32.mrb[0].mxu0
  %v1332 = vadd.f32 0.0, %v1331
  %v1333 = vpop.f32.mrb[0].mxu0
  %v1334 = vpop.f32.mrb[0].mxu0
  %v1335 = vadd.f32 0.0, %v1334
  %v1336 = vpop.f32.mrb[0].mxu0
  %1337 = vmatprep.mubr.bf16.mxu0 %v194
  %1338 = vmatmul.mubr.bf16.gmra.mrb[0].mxu0 %v193
  %v1339 = vpop.f32.mrb[0].mxu0
  %v1340 = vadd.f32 0.0, %v1339
  %v1341 = vpop.f32.mrb[0].mxu0
  %v1342 = vpop.f32.mrb[0].mxu0
  %v1343 = vadd.f32 0.0, %v1342
  %v1344 = vpop.f32.mrb[0].mxu0
  %1345 = vmatprep.mubr.bf16.mxu0 %v196
  %1346 = vmatmul.mubr.bf16.gmra.mrb[0].mxu0 %v195
  %v1347 = vpop.f32.mrb[0].mxu0
  %v1348 = vadd.f32 0.0, %v1347
  %v1349 = vpop.f32.mrb[0].mxu0
  %v1350 = vpop.f32.mrb[0].mxu0
  %v1351 = vadd.f32 0.0, %v1350
  %v1352 = vpop.f32.mrb[0].mxu0
  %1353 = vmatprep.mubr.bf16.mxu0 %v198
  %1354 = vmatmul.mubr.bf16.gmra.mrb[0].mxu0 %v197
  %v1355 = vpop.f32.mrb[0].mxu0
  %v1356 = vadd.f32 0.0, %v1355
  %v1357 = vpop.f32.mrb[0].mxu0
  %v1358 = vpop.f32.mrb[0].mxu0
  %v1359 = vadd.f32 0.0, %v1358
  %v1360 = vpop.f32.mrb[0].mxu0
  %1361 = vmatprep.mubr.bf16.mxu0 %v200
  %1362 = vmatmul.mubr.bf16.gmra.mrb[0].mxu0 %v199
  %v1363 = vpop.f32.mrb[0].mxu0
  %v1364 = vadd.f32 0.0, %v1363
  %v1365 = vpop.f32.mrb[0].mxu0
  %v1366 = vpop.f32.mrb[0].mxu0
  %v1367 = vadd.f32 0.0, %v1366
  %v1368 = vpop.f32.mrb[0].mxu0
  %1369 = vmatprep.mubr.bf16.mxu0 %v202
  %1370 = vmatmul.mubr.bf16.gmra.mrb[0].mxu0 %v201
  %v1371 = vpop.f32.mrb[0].mxu0
  %v1372 = vadd.f32 0.0, %v1371
  %v1373 = vpop.f32.mrb[0].mxu0
  %v1374 = vpop.f32.mrb[0].mxu0
  %v1375 = vadd.f32 0.0, %v1374
  %v1376 = vpop.f32.mrb[0].mxu0
  %1377 = vmatprep.mubr.bf16.mxu0 %v204
  %1378 = vmatmul.mubr.bf16.gmra.mrb[0].mxu0 %v203
  %v1379 = vpop.f32.mrb[0].mxu0
  %v1380 = vadd.f32 0.0, %v1379
  %v1381 = vpop.f32.mrb[0].mxu0
  %v1382 = vpop.f32.mrb[0].mxu0
  %v1383 = vadd.f32 0.0, %v1382
  %v1384 = vpop.f32.mrb[0].mxu0
  %1385 = vmatprep.mubr.bf16.mxu0 %v206
  %1386 = vmatmul.mubr.bf16.gmra.mrb[0].mxu0 %v205
  %v1387 = vpop.f32.mrb[0].mxu0
  %v1388 = vadd.f32 0.0, %v1387
  %v1389 = vpop.f32.mrb[0].mxu0
  %v1390 = vpop.f32.mrb[0].mxu0
  %v1391 = vadd.f32 0.0, %v1390
  %v1392 = vpop.f32.mrb[0].mxu0
  %1393 = vmatprep.mubr.bf16.mxu0 %v208
  %1394 = vmatmul.mubr.bf16.gmra.mrb[0].mxu0 %v207
  %v1395 = vpop.f32.mrb[0].mxu0
  %v1396 = vadd.f32 0.0, %v1395
  %v1397 = vpop.f32.mrb[0].mxu0
  %v1398 = vpop.f32.mrb[0].mxu0
  %v1399 = vadd.f32 0.0, %v1398
  %v1400 = vpop.f32.mrb[0].mxu0
  %1401 = vmatprep.mubr.bf16.mxu0 %v210
  %1402 = vmatmul.mubr.bf16.gmra.mrb[0].mxu0 %v209
  %v1403 = vpop.f32.mrb[0].mxu0
  %v1404 = vadd.f32 0.0, %v1403
  %v1405 = vpop.f32.mrb[0].mxu0
  %v1406 = vpop.f32.mrb[0].mxu0
  %v1407 = vadd.f32 0.0, %v1406
  %v1408 = vpop.f32.mrb[0].mxu0
  %1409 = vmatprep.mubr.bf16.mxu0 %v212
  %1410 = vmatmul.mubr.bf16.gmra.mrb[0].mxu0 %v211
  %v1411 = vpop.f32.mrb[0].mxu0
  %v1412 = vadd.f32 0.0, %v1411
  %v1413 = vpop.f32.mrb[0].mxu0
  %v1414 = vpop.f32.mrb[0].mxu0
  %v1415 = vadd.f32 0.0, %v1414
  %v1416 = vpop.f32.mrb[0].mxu0
  %1417 = vdwg.mxu0
  %v1418 = vpack.c.bf16 %v1295, %v1292
  %v1419 = vpack.c.bf16 %v1303, %v1300
  %v1420 = vpack.c.bf16 %v1311, %v1308
  %v1421 = vpack.c.bf16 %v1319, %v1316
  %v1422 = vpack.c.bf16 %v1327, %v1324
  %v1423 = vpack.c.bf16 %v1335, %v1332
  %v1424 = vpack.c.bf16 %v1343, %v1340
  %v1425 = vpack.c.bf16 %v1351, %v1348
  %v1426 = vpack.c.bf16 %v1359, %v1356
  %v1427 = vpack.c.bf16 %v1367, %v1364
  %v1428 = vpack.c.bf16 %v1375, %v1372
  %v1429 = vpack.c.bf16 %v1383, %v1380
  %v1430 = vpack.c.bf16 %v1391, %v1388
  %v1431 = vpack.c.bf16 %v1399, %v1396
  %v1432 = vpack.c.bf16 %v1407, %v1404
  %v1433 = vpack.c.bf16 %v1415, %v1412
  %s1434 = scalar_lea.vmem %s2, 128
  %v1435 = vld [vmem:[%s1434] sm:$0xf]
  %v1436 = vld [vmem:[%s1434 + $0x4] sm:$0xf]
  %v1437 = vld [vmem:[%s1434 + $0x8] sm:$0xf]
  %v1438 = vld [vmem:[%s1434 + $0xc] sm:$0xf]
  %v1439 = vld [vmem:[%s1434 + $0x10] sm:$0xf]
  %v1440 = vld [vmem:[%s1434 + $0x14] sm:$0xf]
  %v1441 = vld [vmem:[%s1434 + $0x18] sm:$0xf]
  %v1442 = vld [vmem:[%s1434 + $0x1c] sm:$0xf]
  %v1443 = vld [vmem:[%s1434 + $0x20] sm:$0xf]
  %v1444 = vld [vmem:[%s1434 + $0x24] sm:$0xf]
  %v1445 = vld [vmem:[%s1434 + $0x28] sm:$0xf]
  %v1446 = vld [vmem:[%s1434 + $0x2c] sm:$0xf]
  %v1447 = vld [vmem:[%s1434 + $0x30] sm:$0xf]
  %v1448 = vld [vmem:[%s1434 + $0x34] sm:$0xf]
  %v1449 = vld [vmem:[%s1434 + $0x38] sm:$0xf]
  %v1450 = vld [vmem:[%s1434 + $0x3c] sm:$0xf]
  %s1451 = scalar_lea.vmem %s3, 2
  %v1452 = vld [vmem:[%s1451] sm:$0x1]
  %v1454 = vlaneseq
  %v1455 = vshrl.u32 %v1454, 7
  %v1456 = vsub.s32 0, %v1455
  %v1457 = vrot.slane %v1452, %v1456
  %v1475 = vunpack.c.l.b16 %v1435
  %v1476 = vunpack.c.l.b16 %v1436
  %v1477 = vunpack.c.l.b16 %v1437
  %v1478 = vunpack.c.l.b16 %v1438
  %v1479 = vunpack.c.l.b16 %v1439
  %v1480 = vunpack.c.l.b16 %v1440
  %v1481 = vunpack.c.l.b16 %v1441
  %v1482 = vunpack.c.l.b16 %v1442
  %v1483 = vunpack.c.l.b16 %v1443
  %v1484 = vunpack.c.l.b16 %v1444
  %v1485 = vunpack.c.l.b16 %v1445
  %v1486 = vunpack.c.l.b16 %v1446
  %v1487 = vunpack.c.l.b16 %v1447
  %v1488 = vunpack.c.l.b16 %v1448
  %v1489 = vunpack.c.l.b16 %v1449
  %v1490 = vunpack.c.l.b16 %v1450
  %v1491 = vpack.c.b16 %v1476, %v1475
  %v1492 = vpack.c.b16 %v1478, %v1477
  %v1493 = vpack.c.b16 %v1480, %v1479
  %v1494 = vpack.c.b16 %v1482, %v1481
  %v1495 = vpack.c.b16 %v1484, %v1483
  %v1496 = vpack.c.b16 %v1486, %v1485
  %v1497 = vpack.c.b16 %v1488, %v1487
  %v1498 = vpack.c.b16 %v1490, %v1489
  %1507 = vmatprep.subr.bf16.mxu0 0
  %1508 = vmatpush1.bf16.msra.mxu0 %v1491
  %1509 = vmatprep.subr.bf16.mxu0 0
  %1510 = vmatpush1.bf16.msra.mxu0 %v1492
  %1511 = vmatprep.subr.bf16.mxu0 0
  %1512 = vmatpush1.bf16.msra.mxu0 %v1493
  %1513 = vmatprep.subr.bf16.mxu0 0
  %1514 = vmatpush1.bf16.msra.mxu0 %v1494
  %1515 = vmatprep.subr.bf16.mxu0 0
  %1516 = vmatpush1.bf16.msra.mxu0 %v1495
  %1517 = vmatprep.subr.bf16.mxu0 0
  %1518 = vmatpush1.bf16.msra.mxu0 %v1496
  %1519 = vmatprep.subr.bf16.mxu0 0
  %1520 = vmatpush1.bf16.msra.mxu0 %v1497
  %1521 = vmatprep.subr.bf16.mxu0 0
  %1522 = vmatpush1.bf16.msra.mxu0 %v1498
  %1523 = vmatprep.subr.bf16.mxu0 0
  %1524 = vmatpush1.bf16.msra.mxu0 0
  %1525 = vmatprep.subr.bf16.mxu0 0
  %1526 = vmatpush1.bf16.msra.mxu0 0
  %1527 = vmatprep.subr.bf16.mxu0 0
  %1528 = vmatpush1.bf16.msra.mxu0 0
  %1529 = vmatprep.subr.bf16.mxu0 0
  %1530 = vmatpush1.bf16.msra.mxu0 0
  %1531 = vmatprep.subr.bf16.mxu0 0
  %1532 = vmatpush1.bf16.msra.mxu0 0
  %1533 = vmatprep.subr.bf16.mxu0 0
  %1534 = vmatpush1.bf16.msra.mxu0 0
  %1535 = vmatprep.subr.bf16.mxu0 0
  %1536 = vmatpush1.bf16.msra.mxu0 0
  %1537 = vmatprep.subr.bf16.mxu0 0
  %1538 = vmatpush1.bf16.msra.mxu0 0
  %1539 = vmatprep.mubr.bf16.mxu0 0
  %1540 = vmatmul.mubr.bf16.gmra.mrb[0].mxu0 %v1418
  %v1541 = vpop.f32.mrb[0].mxu0
  %v1542 = vadd.f32 %v1457, %v1541
  %v1543 = vpop.f32.mrb[0].mxu0
  %v1544 = vpop.f32.mrb[0].mxu0
  %v1545 = vadd.f32 %v1457, %v1544
  %v1546 = vpop.f32.mrb[0].mxu0
  %1547 = vmatprep.mubr.bf16.mxu0 0
  %1548 = vmatmul.mubr.bf16.gmra.mrb[0].mxu0 %v1419
  %v1549 = vpop.f32.mrb[0].mxu0
  %v1550 = vadd.f32 %v1457, %v1549
  %v1551 = vpop.f32.mrb[0].mxu0
  %v1552 = vpop.f32.mrb[0].mxu0
  %v1553 = vadd.f32 %v1457, %v1552
  %v1554 = vpop.f32.mrb[0].mxu0
  %1555 = vmatprep.mubr.bf16.mxu0 0
  %1556 = vmatmul.mubr.bf16.gmra.mrb[0].mxu0 %v1420
  %v1557 = vpop.f32.mrb[0].mxu0
  %v1558 = vadd.f32 %v1457, %v1557
  %v1559 = vpop.f32.mrb[0].mxu0
  %v1560 = vpop.f32.mrb[0].mxu0
  %v1561 = vadd.f32 %v1457, %v1560
  %v1562 = vpop.f32.mrb[0].mxu0
  %1563 = vmatprep.mubr.bf16.mxu0 0
  %1564 = vmatmul.mubr.bf16.gmra.mrb[0].mxu0 %v1421
  %v1565 = vpop.f32.mrb[0].mxu0
  %v1566 = vadd.f32 %v1457, %v1565
  %v1567 = vpop.f32.mrb[0].mxu0
  %v1568 = vpop.f32.mrb[0].mxu0
  %v1569 = vadd.f32 %v1457, %v1568
  %v1570 = vpop.f32.mrb[0].mxu0
  %1571 = vmatprep.mubr.bf16.mxu0 0
  %1572 = vmatmul.mubr.bf16.gmra.mrb[0].mxu0 %v1422
  %v1573 = vpop.f32.mrb[0].mxu0
  %v1574 = vadd.f32 %v1457, %v1573
  %v1575 = vpop.f32.mrb[0].mxu0
  %v1576 = vpop.f32.mrb[0].mxu0
  %v1577 = vadd.f32 %v1457, %v1576
  %v1578 = vpop.f32.mrb[0].mxu0
  %1579 = vmatprep.mubr.bf16.mxu0 0
  %1580 = vmatmul.mubr.bf16.gmra.mrb[0].mxu0 %v1423
  %v1581 = vpop.f32.mrb[0].mxu0
  %v1582 = vadd.f32 %v1457, %v1581
  %v1583 = vpop.f32.mrb[0].mxu0
  %v1584 = vpop.f32.mrb[0].mxu0
  %v1585 = vadd.f32 %v1457, %v1584
  %v1586 = vpop.f32.mrb[0].mxu0
  %1587 = vmatprep.mubr.bf16.mxu0 0
  %1588 = vmatmul.mubr.bf16.gmra.mrb[0].mxu0 %v1424
  %v1589 = vpop.f32.mrb[0].mxu0
  %v1590 = vadd.f32 %v1457, %v1589
  %v1591 = vpop.f32.mrb[0].mxu0
  %v1592 = vpop.f32.mrb[0].mxu0
  %v1593 = vadd.f32 %v1457, %v1592
  %v1594 = vpop.f32.mrb[0].mxu0
  %1595 = vmatprep.mubr.bf16.mxu0 0
  %1596 = vmatmul.mubr.bf16.gmra.mrb[0].mxu0 %v1425
  %v1597 = vpop.f32.mrb[0].mxu0
  %v1598 = vadd.f32 %v1457, %v1597
  %v1599 = vpop.f32.mrb[0].mxu0
  %v1600 = vpop.f32.mrb[0].mxu0
  %v1601 = vadd.f32 %v1457, %v1600
  %v1602 = vpop.f32.mrb[0].mxu0
  %1603 = vmatprep.mubr.bf16.mxu0 0
  %1604 = vmatmul.mubr.bf16.gmra.mrb[0].mxu0 %v1426
  %v1605 = vpop.f32.mrb[0].mxu0
  %v1606 = vadd.f32 %v1457, %v1605
  %v1607 = vpop.f32.mrb[0].mxu0
  %v1608 = vpop.f32.mrb[0].mxu0
  %v1609 = vadd.f32 %v1457, %v1608
  %v1610 = vpop.f32.mrb[0].mxu0
  %1611 = vmatprep.mubr.bf16.mxu0 0
  %1612 = vmatmul.mubr.bf16.gmra.mrb[0].mxu0 %v1427
  %v1613 = vpop.f32.mrb[0].mxu0
  %v1614 = vadd.f32 %v1457, %v1613
  %v1615 = vpop.f32.mrb[0].mxu0
  %v1616 = vpop.f32.mrb[0].mxu0
  %v1617 = vadd.f32 %v1457, %v1616
  %v1618 = vpop.f32.mrb[0].mxu0
  %1619 = vmatprep.mubr.bf16.mxu0 0
  %1620 = vmatmul.mubr.bf16.gmra.mrb[0].mxu0 %v1428
  %v1621 = vpop.f32.mrb[0].mxu0
  %v1622 = vadd.f32 %v1457, %v1621
  %v1623 = vpop.f32.mrb[0].mxu0
  %v1624 = vpop.f32.mrb[0].mxu0
  %v1625 = vadd.f32 %v1457, %v1624
  %v1626 = vpop.f32.mrb[0].mxu0
  %1627 = vmatprep.mubr.bf16.mxu0 0
  %1628 = vmatmul.mubr.bf16.gmra.mrb[0].mxu0 %v1429
  %v1629 = vpop.f32.mrb[0].mxu0
  %v1630 = vadd.f32 %v1457, %v1629
  %v1631 = vpop.f32.mrb[0].mxu0
  %v1632 = vpop.f32.mrb[0].mxu0
  %v1633 = vadd.f32 %v1457, %v1632
  %v1634 = vpop.f32.mrb[0].mxu0
  %1635 = vmatprep.mubr.bf16.mxu0 0
  %1636 = vmatmul.mubr.bf16.gmra.mrb[0].mxu0 %v1430
  %v1637 = vpop.f32.mrb[0].mxu0
  %v1638 = vadd.f32 %v1457, %v1637
  %v1639 = vpop.f32.mrb[0].mxu0
  %v1640 = vpop.f32.mrb[0].mxu0
  %v1641 = vadd.f32 %v1457, %v1640
  %v1642 = vpop.f32.mrb[0].mxu0
  %1643 = vmatprep.mubr.bf16.mxu0 0
  %1644 = vmatmul.mubr.bf16.gmra.mrb[0].mxu0 %v1431
  %v1645 = vpop.f32.mrb[0].mxu0
  %v1646 = vadd.f32 %v1457, %v1645
  %v1647 = vpop.f32.mrb[0].mxu0
  %v1648 = vpop.f32.mrb[0].mxu0
  %v1649 = vadd.f32 %v1457, %v1648
  %v1650 = vpop.f32.mrb[0].mxu0
  %1651 = vmatprep.mubr.bf16.mxu0 0
  %1652 = vmatmul.mubr.bf16.gmra.mrb[0].mxu0 %v1432
  %v1653 = vpop.f32.mrb[0].mxu0
  %v1654 = vadd.f32 %v1457, %v1653
  %v1655 = vpop.f32.mrb[0].mxu0
  %v1656 = vpop.f32.mrb[0].mxu0
  %v1657 = vadd.f32 %v1457, %v1656
  %v1658 = vpop.f32.mrb[0].mxu0
  %1659 = vmatprep.mubr.bf16.mxu0 0
  %1660 = vmatmul.mubr.bf16.gmra.mrb[0].mxu0 %v1433
  %v1661 = vpop.f32.mrb[0].mxu0
  %v1662 = vadd.f32 %v1457, %v1661
  %v1663 = vpop.f32.mrb[0].mxu0
  %v1664 = vpop.f32.mrb[0].mxu0
  %v1665 = vadd.f32 %v1457, %v1664
  %v1666 = vpop.f32.mrb[0].mxu0
  %1667 = vdwg.mxu0
  %v1668 = vmax.f32 %v1542, 0.0
  %v1669 = vmax.f32 %v1545, 0.0
  %v1670 = vmax.f32 %v1550, 0.0
  %v1671 = vmax.f32 %v1553, 0.0
  %v1672 = vmax.f32 %v1558, 0.0
  %v1673 = vmax.f32 %v1561, 0.0
  %v1674 = vmax.f32 %v1566, 0.0
  %v1675 = vmax.f32 %v1569, 0.0
  %v1676 = vmax.f32 %v1574, 0.0
  %v1677 = vmax.f32 %v1577, 0.0
  %v1678 = vmax.f32 %v1582, 0.0
  %v1679 = vmax.f32 %v1585, 0.0
  %v1680 = vmax.f32 %v1590, 0.0
  %v1681 = vmax.f32 %v1593, 0.0
  %v1682 = vmax.f32 %v1598, 0.0
  %v1683 = vmax.f32 %v1601, 0.0
  %v1684 = vmax.f32 %v1606, 0.0
  %v1685 = vmax.f32 %v1609, 0.0
  %v1686 = vmax.f32 %v1614, 0.0
  %v1687 = vmax.f32 %v1617, 0.0
  %v1688 = vmax.f32 %v1622, 0.0
  %v1689 = vmax.f32 %v1625, 0.0
  %v1690 = vmax.f32 %v1630, 0.0
  %v1691 = vmax.f32 %v1633, 0.0
  %v1692 = vmax.f32 %v1638, 0.0
  %v1693 = vmax.f32 %v1641, 0.0
  %v1694 = vmax.f32 %v1646, 0.0
  %v1695 = vmax.f32 %v1649, 0.0
  %v1696 = vmax.f32 %v1654, 0.0
  %v1697 = vmax.f32 %v1657, 0.0
  %v1698 = vmax.f32 %v1662, 0.0
  %v1699 = vmax.f32 %v1665, 0.0
  %v1700 = vpack.c.bf16 %v1669, %v1668
  %v1701 = vpack.c.bf16 %v1671, %v1670
  %v1702 = vpack.c.bf16 %v1673, %v1672
  %v1703 = vpack.c.bf16 %v1675, %v1674
  %v1704 = vpack.c.bf16 %v1677, %v1676
  %v1705 = vpack.c.bf16 %v1679, %v1678
  %v1706 = vpack.c.bf16 %v1681, %v1680
  %v1707 = vpack.c.bf16 %v1683, %v1682
  %v1708 = vpack.c.bf16 %v1685, %v1684
  %v1709 = vpack.c.bf16 %v1687, %v1686
  %v1710 = vpack.c.bf16 %v1689, %v1688
  %v1711 = vpack.c.bf16 %v1691, %v1690
  %v1712 = vpack.c.bf16 %v1693, %v1692
  %v1713 = vpack.c.bf16 %v1695, %v1694
  %v1714 = vpack.c.bf16 %v1697, %v1696
  %v1715 = vpack.c.bf16 %v1699, %v1698
  %1716 = vmatprep.subr.bf16.mxu0 0
  %1717 = vmatpush1.bf16.msra.mxu0 %v1700
  %1718 = vmatprep.subr.bf16.mxu0 0
  %1719 = vmatpush1.bf16.msra.mxu0 %v1701
  %1720 = vmatprep.subr.bf16.mxu0 0
  %1721 = vmatpush1.bf16.msra.mxu0 %v1702
  %1722 = vmatprep.subr.bf16.mxu0 0
  %1723 = vmatpush1.bf16.msra.mxu0 %v1703
  %1724 = vmatprep.subr.bf16.mxu0 0
  %1725 = vmatpush1.bf16.msra.mxu0 %v1704
  %1726 = vmatprep.subr.bf16.mxu0 0
  %1727 = vmatpush1.bf16.msra.mxu0 %v1705
  %1728 = vmatprep.subr.bf16.mxu0 0
  %1729 = vmatpush1.bf16.msra.mxu0 %v1706
  %1730 = vmatprep.subr.bf16.mxu0 0
  %1731 = vmatpush1.bf16.msra.mxu0 %v1707
  %1732 = vmatprep.subr.bf16.mxu0 0
  %1733 = vmatpush1.bf16.msra.mxu0 %v1708
  %1734 = vmatprep.subr.bf16.mxu0 0
  %1735 = vmatpush1.bf16.msra.mxu0 %v1709
  %1736 = vmatprep.subr.bf16.mxu0 0
  %1737 = vmatpush1.bf16.msra.mxu0 %v1710
  %1738 = vmatprep.subr.bf16.mxu0 0
  %1739 = vmatpush1.bf16.msra.mxu0 %v1711
  %1740 = vmatprep.subr.bf16.mxu0 0
  %1741 = vmatpush1.bf16.msra.mxu0 %v1712
  %1742 = vmatprep.subr.bf16.mxu0 0
  %1743 = vmatpush1.bf16.msra.mxu0 %v1713
  %1744 = vmatprep.subr.bf16.mxu0 0
  %1745 = vmatpush1.bf16.msra.mxu0 %v1714
  %1746 = vmatprep.subr.bf16.mxu0 0
  %1747 = vmatpush1.bf16.msra.mxu0 %v1715
  %1748 = vmatprep.mubr.bf16.mxu0 %v182
  %1749 = vmatmul.mubr.bf16.gmra.mrb[0].mxu0 %v181
  %v1750 = vpop.f32.mrb[0].mxu0
  %v1751 = vadd.f32 0.0, %v1750
  %v1752 = vpop.f32.mrb[0].mxu0
  %v1753 = vpop.f32.mrb[0].mxu0
  %v1754 = vadd.f32 0.0, %v1753
  %v1755 = vpop.f32.mrb[0].mxu0
  %1756 = vmatprep.mubr.bf16.mxu0 %v184
  %1757 = vmatmul.mubr.bf16.gmra.mrb[0].mxu0 %v183
  %v1758 = vpop.f32.mrb[0].mxu0
  %v1759 = vadd.f32 0.0, %v1758
  %v1760 = vpop.f32.mrb[0].mxu0
  %v1761 = vpop.f32.mrb[0].mxu0
  %v1762 = vadd.f32 0.0, %v1761
  %v1763 = vpop.f32.mrb[0].mxu0
  %1764 = vmatprep.mubr.bf16.mxu0 %v186
  %1765 = vmatmul.mubr.bf16.gmra.mrb[0].mxu0 %v185
  %v1766 = vpop.f32.mrb[0].mxu0
  %v1767 = vadd.f32 0.0, %v1766
  %v1768 = vpop.f32.mrb[0].mxu0
  %v1769 = vpop.f32.mrb[0].mxu0
  %v1770 = vadd.f32 0.0, %v1769
  %v1771 = vpop.f32.mrb[0].mxu0
  %1772 = vmatprep.mubr.bf16.mxu0 %v188
  %1773 = vmatmul.mubr.bf16.gmra.mrb[0].mxu0 %v187
  %v1774 = vpop.f32.mrb[0].mxu0
  %v1775 = vadd.f32 0.0, %v1774
  %v1776 = vpop.f32.mrb[0].mxu0
  %v1777 = vpop.f32.mrb[0].mxu0
  %v1778 = vadd.f32 0.0, %v1777
  %v1779 = vpop.f32.mrb[0].mxu0
  %1780 = vmatprep.mubr.bf16.mxu0 %v190
  %1781 = vmatmul.mubr.bf16.gmra.mrb[0].mxu0 %v189
  %v1782 = vpop.f32.mrb[0].mxu0
  %v1783 = vadd.f32 0.0, %v1782
  %v1784 = vpop.f32.mrb[0].mxu0
  %v1785 = vpop.f32.mrb[0].mxu0
  %v1786 = vadd.f32 0.0, %v1785
  %v1787 = vpop.f32.mrb[0].mxu0
  %1788 = vmatprep.mubr.bf16.mxu0 %v192
  %1789 = vmatmul.mubr.bf16.gmra.mrb[0].mxu0 %v191
  %v1790 = vpop.f32.mrb[0].mxu0
  %v1791 = vadd.f32 0.0, %v1790
  %v1792 = vpop.f32.mrb[0].mxu0
  %v1793 = vpop.f32.mrb[0].mxu0
  %v1794 = vadd.f32 0.0, %v1793
  %v1795 = vpop.f32.mrb[0].mxu0
  %1796 = vmatprep.mubr.bf16.mxu0 %v194
  %1797 = vmatmul.mubr.bf16.gmra.mrb[0].mxu0 %v193
  %v1798 = vpop.f32.mrb[0].mxu0
  %v1799 = vadd.f32 0.0, %v1798
  %v1800 = vpop.f32.mrb[0].mxu0
  %v1801 = vpop.f32.mrb[0].mxu0
  %v1802 = vadd.f32 0.0, %v1801
  %v1803 = vpop.f32.mrb[0].mxu0
  %1804 = vmatprep.mubr.bf16.mxu0 %v196
  %1805 = vmatmul.mubr.bf16.gmra.mrb[0].mxu0 %v195
  %v1806 = vpop.f32.mrb[0].mxu0
  %v1807 = vadd.f32 0.0, %v1806
  %v1808 = vpop.f32.mrb[0].mxu0
  %v1809 = vpop.f32.mrb[0].mxu0
  %v1810 = vadd.f32 0.0, %v1809
  %v1811 = vpop.f32.mrb[0].mxu0
  %1812 = vmatprep.mubr.bf16.mxu0 %v198
  %1813 = vmatmul.mubr.bf16.gmra.mrb[0].mxu0 %v197
  %v1814 = vpop.f32.mrb[0].mxu0
  %v1815 = vadd.f32 0.0, %v1814
  %v1816 = vpop.f32.mrb[0].mxu0
  %v1817 = vpop.f32.mrb[0].mxu0
  %v1818 = vadd.f32 0.0, %v1817
  %v1819 = vpop.f32.mrb[0].mxu0
  %1820 = vmatprep.mubr.bf16.mxu0 %v200
  %1821 = vmatmul.mubr.bf16.gmra.mrb[0].mxu0 %v199
  %v1822 = vpop.f32.mrb[0].mxu0
  %v1823 = vadd.f32 0.0, %v1822
  %v1824 = vpop.f32.mrb[0].mxu0
  %v1825 = vpop.f32.mrb[0].mxu0
  %v1826 = vadd.f32 0.0, %v1825
  %v1827 = vpop.f32.mrb[0].mxu0
  %1828 = vmatprep.mubr.bf16.mxu0 %v202
  %1829 = vmatmul.mubr.bf16.gmra.mrb[0].mxu0 %v201
  %v1830 = vpop.f32.mrb[0].mxu0
  %v1831 = vadd.f32 0.0, %v1830
  %v1832 = vpop.f32.mrb[0].mxu0
  %v1833 = vpop.f32.mrb[0].mxu0
  %v1834 = vadd.f32 0.0, %v1833
  %v1835 = vpop.f32.mrb[0].mxu0
  %1836 = vmatprep.mubr.bf16.mxu0 %v204
  %1837 = vmatmul.mubr.bf16.gmra.mrb[0].mxu0 %v203
  %v1838 = vpop.f32.mrb[0].mxu0
  %v1839 = vadd.f32 0.0, %v1838
  %v1840 = vpop.f32.mrb[0].mxu0
  %v1841 = vpop.f32.mrb[0].mxu0
  %v1842 = vadd.f32 0.0, %v1841
  %v1843 = vpop.f32.mrb[0].mxu0
  %1844 = vmatprep.mubr.bf16.mxu0 %v206
  %1845 = vmatmul.mubr.bf16.gmra.mrb[0].mxu0 %v205
  %v1846 = vpop.f32.mrb[0].mxu0
  %v1847 = vadd.f32 0.0, %v1846
  %v1848 = vpop.f32.mrb[0].mxu0
  %v1849 = vpop.f32.mrb[0].mxu0
  %v1850 = vadd.f32 0.0, %v1849
  %v1851 = vpop.f32.mrb[0].mxu0
  %1852 = vmatprep.mubr.bf16.mxu0 %v208
  %1853 = vmatmul.mubr.bf16.gmra.mrb[0].mxu0 %v207
  %v1854 = vpop.f32.mrb[0].mxu0
  %v1855 = vadd.f32 0.0, %v1854
  %v1856 = vpop.f32.mrb[0].mxu0
  %v1857 = vpop.f32.mrb[0].mxu0
  %v1858 = vadd.f32 0.0, %v1857
  %v1859 = vpop.f32.mrb[0].mxu0
  %1860 = vmatprep.mubr.bf16.mxu0 %v210
  %1861 = vmatmul.mubr.bf16.gmra.mrb[0].mxu0 %v209
  %v1862 = vpop.f32.mrb[0].mxu0
  %v1863 = vadd.f32 0.0, %v1862
  %v1864 = vpop.f32.mrb[0].mxu0
  %v1865 = vpop.f32.mrb[0].mxu0
  %v1866 = vadd.f32 0.0, %v1865
  %v1867 = vpop.f32.mrb[0].mxu0
  %1868 = vmatprep.mubr.bf16.mxu0 %v212
  %1869 = vmatmul.mubr.bf16.gmra.mrb[0].mxu0 %v211
  %v1870 = vpop.f32.mrb[0].mxu0
  %v1871 = vadd.f32 0.0, %v1870
  %v1872 = vpop.f32.mrb[0].mxu0
  %v1873 = vpop.f32.mrb[0].mxu0
  %v1874 = vadd.f32 0.0, %v1873
  %v1875 = vpop.f32.mrb[0].mxu0
  %1876 = vdwg.mxu0
  %v1877 = vpack.c.bf16 %v1754, %v1751
  %v1878 = vpack.c.bf16 %v1762, %v1759
  %v1879 = vpack.c.bf16 %v1770, %v1767
  %v1880 = vpack.c.bf16 %v1778, %v1775
  %v1881 = vpack.c.bf16 %v1786, %v1783
  %v1882 = vpack.c.bf16 %v1794, %v1791
  %v1883 = vpack.c.bf16 %v1802, %v1799
  %v1884 = vpack.c.bf16 %v1810, %v1807
  %v1885 = vpack.c.bf16 %v1818, %v1815
  %v1886 = vpack.c.bf16 %v1826, %v1823
  %v1887 = vpack.c.bf16 %v1834, %v1831
  %v1888 = vpack.c.bf16 %v1842, %v1839
  %v1889 = vpack.c.bf16 %v1850, %v1847
  %v1890 = vpack.c.bf16 %v1858, %v1855
  %v1891 = vpack.c.bf16 %v1866, %v1863
  %v1892 = vpack.c.bf16 %v1874, %v1871
  %s1893 = scalar_lea.vmem %s2, 192
  %v1894 = vld [vmem:[%s1893] sm:$0xf]
  %v1895 = vld [vmem:[%s1893 + $0x4] sm:$0xf]
  %v1896 = vld [vmem:[%s1893 + $0x8] sm:$0xf]
  %v1897 = vld [vmem:[%s1893 + $0xc] sm:$0xf]
  %v1898 = vld [vmem:[%s1893 + $0x10] sm:$0xf]
  %v1899 = vld [vmem:[%s1893 + $0x14] sm:$0xf]
  %v1900 = vld [vmem:[%s1893 + $0x18] sm:$0xf]
  %v1901 = vld [vmem:[%s1893 + $0x1c] sm:$0xf]
  %v1902 = vld [vmem:[%s1893 + $0x20] sm:$0xf]
  %v1903 = vld [vmem:[%s1893 + $0x24] sm:$0xf]
  %v1904 = vld [vmem:[%s1893 + $0x28] sm:$0xf]
  %v1905 = vld [vmem:[%s1893 + $0x2c] sm:$0xf]
  %v1906 = vld [vmem:[%s1893 + $0x30] sm:$0xf]
  %v1907 = vld [vmem:[%s1893 + $0x34] sm:$0xf]
  %v1908 = vld [vmem:[%s1893 + $0x38] sm:$0xf]
  %v1909 = vld [vmem:[%s1893 + $0x3c] sm:$0xf]
  %s1910 = scalar_lea.vmem %s3, 3
  %v1911 = vld [vmem:[%s1910] sm:$0x1]
  %v1913 = vlaneseq
  %v1914 = vshrl.u32 %v1913, 7
  %v1915 = vsub.s32 0, %v1914
  %v1916 = vrot.slane %v1911, %v1915
  %v1934 = vunpack.c.l.b16 %v1894
  %v1935 = vunpack.c.l.b16 %v1895
  %v1936 = vunpack.c.l.b16 %v1896
  %v1937 = vunpack.c.l.b16 %v1897
  %v1938 = vunpack.c.l.b16 %v1898
  %v1939 = vunpack.c.l.b16 %v1899
  %v1940 = vunpack.c.l.b16 %v1900
  %v1941 = vunpack.c.l.b16 %v1901
  %v1942 = vunpack.c.l.b16 %v1902
  %v1943 = vunpack.c.l.b16 %v1903
  %v1944 = vunpack.c.l.b16 %v1904
  %v1945 = vunpack.c.l.b16 %v1905
  %v1946 = vunpack.c.l.b16 %v1906
  %v1947 = vunpack.c.l.b16 %v1907
  %v1948 = vunpack.c.l.b16 %v1908
  %v1949 = vunpack.c.l.b16 %v1909
  %v1950 = vpack.c.b16 %v1935, %v1934
  %v1951 = vpack.c.b16 %v1937, %v1936
  %v1952 = vpack.c.b16 %v1939, %v1938
  %v1953 = vpack.c.b16 %v1941, %v1940
  %v1954 = vpack.c.b16 %v1943, %v1942
  %v1955 = vpack.c.b16 %v1945, %v1944
  %v1956 = vpack.c.b16 %v1947, %v1946
  %v1957 = vpack.c.b16 %v1949, %v1948
  %1966 = vmatprep.subr.bf16.mxu0 0
  %1967 = vmatpush1.bf16.msra.mxu0 %v1950
  %1968 = vmatprep.subr.bf16.mxu0 0
  %1969 = vmatpush1.bf16.msra.mxu0 %v1951
  %1970 = vmatprep.subr.bf16.mxu0 0
  %1971 = vmatpush1.bf16.msra.mxu0 %v1952
  %1972 = vmatprep.subr.bf16.mxu0 0
  %1973 = vmatpush1.bf16.msra.mxu0 %v1953
  %1974 = vmatprep.subr.bf16.mxu0 0
  %1975 = vmatpush1.bf16.msra.mxu0 %v1954
  %1976 = vmatprep.subr.bf16.mxu0 0
  %1977 = vmatpush1.bf16.msra.mxu0 %v1955
  %1978 = vmatprep.subr.bf16.mxu0 0
  %1979 = vmatpush1.bf16.msra.mxu0 %v1956
  %1980 = vmatprep.subr.bf16.mxu0 0
  %1981 = vmatpush1.bf16.msra.mxu0 %v1957
  %1982 = vmatprep.subr.bf16.mxu0 0
  %1983 = vmatpush1.bf16.msra.mxu0 0
  %1984 = vmatprep.subr.bf16.mxu0 0
  %1985 = vmatpush1.bf16.msra.mxu0 0
  %1986 = vmatprep.subr.bf16.mxu0 0
  %1987 = vmatpush1.bf16.msra.mxu0 0
  %1988 = vmatprep.subr.bf16.mxu0 0
  %1989 = vmatpush1.bf16.msra.mxu0 0
  %1990 = vmatprep.subr.bf16.mxu0 0
  %1991 = vmatpush1.bf16.msra.mxu0 0
  %1992 = vmatprep.subr.bf16.mxu0 0
  %1993 = vmatpush1.bf16.msra.mxu0 0
  %1994 = vmatprep.subr.bf16.mxu0 0
  %1995 = vmatpush1.bf16.msra.mxu0 0
  %1996 = vmatprep.subr.bf16.mxu0 0
  %1997 = vmatpush1.bf16.msra.mxu0 0
  %1998 = vmatprep.mubr.bf16.mxu0 0
  %1999 = vmatmul.mubr.bf16.gmra.mrb[0].mxu0 %v1877
  %v2000 = vpop.f32.mrb[0].mxu0
  %v2001 = vadd.f32 %v1916, %v2000
  %v2002 = vpop.f32.mrb[0].mxu0
  %v2003 = vpop.f32.mrb[0].mxu0
  %v2004 = vadd.f32 %v1916, %v2003
  %v2005 = vpop.f32.mrb[0].mxu0
  %2006 = vmatprep.mubr.bf16.mxu0 0
  %2007 = vmatmul.mubr.bf16.gmra.mrb[0].mxu0 %v1878
  %v2008 = vpop.f32.mrb[0].mxu0
  %v2009 = vadd.f32 %v1916, %v2008
  %v2010 = vpop.f32.mrb[0].mxu0
  %v2011 = vpop.f32.mrb[0].mxu0
  %v2012 = vadd.f32 %v1916, %v2011
  %v2013 = vpop.f32.mrb[0].mxu0
  %2014 = vmatprep.mubr.bf16.mxu0 0
  %2015 = vmatmul.mubr.bf16.gmra.mrb[0].mxu0 %v1879
  %v2016 = vpop.f32.mrb[0].mxu0
  %v2017 = vadd.f32 %v1916, %v2016
  %v2018 = vpop.f32.mrb[0].mxu0
  %v2019 = vpop.f32.mrb[0].mxu0
  %v2020 = vadd.f32 %v1916, %v2019
  %v2021 = vpop.f32.mrb[0].mxu0
  %2022 = vmatprep.mubr.bf16.mxu0 0
  %2023 = vmatmul.mubr.bf16.gmra.mrb[0].mxu0 %v1880
  %v2024 = vpop.f32.mrb[0].mxu0
  %v2025 = vadd.f32 %v1916, %v2024
  %v2026 = vpop.f32.mrb[0].mxu0
  %v2027 = vpop.f32.mrb[0].mxu0
  %v2028 = vadd.f32 %v1916, %v2027
  %v2029 = vpop.f32.mrb[0].mxu0
  %2030 = vmatprep.mubr.bf16.mxu0 0
  %2031 = vmatmul.mubr.bf16.gmra.mrb[0].mxu0 %v1881
  %v2032 = vpop.f32.mrb[0].mxu0
  %v2033 = vadd.f32 %v1916, %v2032
  %v2034 = vpop.f32.mrb[0].mxu0
  %v2035 = vpop.f32.mrb[0].mxu0
  %v2036 = vadd.f32 %v1916, %v2035
  %v2037 = vpop.f32.mrb[0].mxu0
  %2038 = vmatprep.mubr.bf16.mxu0 0
  %2039 = vmatmul.mubr.bf16.gmra.mrb[0].mxu0 %v1882
  %v2040 = vpop.f32.mrb[0].mxu0
  %v2041 = vadd.f32 %v1916, %v2040
  %v2042 = vpop.f32.mrb[0].mxu0
  %v2043 = vpop.f32.mrb[0].mxu0
  %v2044 = vadd.f32 %v1916, %v2043
  %v2045 = vpop.f32.mrb[0].mxu0
  %2046 = vmatprep.mubr.bf16.mxu0 0
  %2047 = vmatmul.mubr.bf16.gmra.mrb[0].mxu0 %v1883
  %v2048 = vpop.f32.mrb[0].mxu0
  %v2049 = vadd.f32 %v1916, %v2048
  %v2050 = vpop.f32.mrb[0].mxu0
  %v2051 = vpop.f32.mrb[0].mxu0
  %v2052 = vadd.f32 %v1916, %v2051
  %v2053 = vpop.f32.mrb[0].mxu0
  %2054 = vmatprep.mubr.bf16.mxu0 0
  %2055 = vmatmul.mubr.bf16.gmra.mrb[0].mxu0 %v1884
  %v2056 = vpop.f32.mrb[0].mxu0
  %v2057 = vadd.f32 %v1916, %v2056
  %v2058 = vpop.f32.mrb[0].mxu0
  %v2059 = vpop.f32.mrb[0].mxu0
  %v2060 = vadd.f32 %v1916, %v2059
  %v2061 = vpop.f32.mrb[0].mxu0
  %2062 = vmatprep.mubr.bf16.mxu0 0
  %2063 = vmatmul.mubr.bf16.gmra.mrb[0].mxu0 %v1885
  %v2064 = vpop.f32.mrb[0].mxu0
  %v2065 = vadd.f32 %v1916, %v2064
  %v2066 = vpop.f32.mrb[0].mxu0
  %v2067 = vpop.f32.mrb[0].mxu0
  %v2068 = vadd.f32 %v1916, %v2067
  %v2069 = vpop.f32.mrb[0].mxu0
  %2070 = vmatprep.mubr.bf16.mxu0 0
  %2071 = vmatmul.mubr.bf16.gmra.mrb[0].mxu0 %v1886
  %v2072 = vpop.f32.mrb[0].mxu0
  %v2073 = vadd.f32 %v1916, %v2072
  %v2074 = vpop.f32.mrb[0].mxu0
  %v2075 = vpop.f32.mrb[0].mxu0
  %v2076 = vadd.f32 %v1916, %v2075
  %v2077 = vpop.f32.mrb[0].mxu0
  %2078 = vmatprep.mubr.bf16.mxu0 0
  %2079 = vmatmul.mubr.bf16.gmra.mrb[0].mxu0 %v1887
  %v2080 = vpop.f32.mrb[0].mxu0
  %v2081 = vadd.f32 %v1916, %v2080
  %v2082 = vpop.f32.mrb[0].mxu0
  %v2083 = vpop.f32.mrb[0].mxu0
  %v2084 = vadd.f32 %v1916, %v2083
  %v2085 = vpop.f32.mrb[0].mxu0
  %2086 = vmatprep.mubr.bf16.mxu0 0
  %2087 = vmatmul.mubr.bf16.gmra.mrb[0].mxu0 %v1888
  %v2088 = vpop.f32.mrb[0].mxu0
  %v2089 = vadd.f32 %v1916, %v2088
  %v2090 = vpop.f32.mrb[0].mxu0
  %v2091 = vpop.f32.mrb[0].mxu0
  %v2092 = vadd.f32 %v1916, %v2091
  %v2093 = vpop.f32.mrb[0].mxu0
  %2094 = vmatprep.mubr.bf16.mxu0 0
  %2095 = vmatmul.mubr.bf16.gmra.mrb[0].mxu0 %v1889
  %v2096 = vpop.f32.mrb[0].mxu0
  %v2097 = vadd.f32 %v1916, %v2096
  %v2098 = vpop.f32.mrb[0].mxu0
  %v2099 = vpop.f32.mrb[0].mxu0
  %v2100 = vadd.f32 %v1916, %v2099
  %v2101 = vpop.f32.mrb[0].mxu0
  %2102 = vmatprep.mubr.bf16.mxu0 0
  %2103 = vmatmul.mubr.bf16.gmra.mrb[0].mxu0 %v1890
  %v2104 = vpop.f32.mrb[0].mxu0
  %v2105 = vadd.f32 %v1916, %v2104
  %v2106 = vpop.f32.mrb[0].mxu0
  %v2107 = vpop.f32.mrb[0].mxu0
  %v2108 = vadd.f32 %v1916, %v2107
  %v2109 = vpop.f32.mrb[0].mxu0
  %2110 = vmatprep.mubr.bf16.mxu0 0
  %2111 = vmatmul.mubr.bf16.gmra.mrb[0].mxu0 %v1891
  %v2112 = vpop.f32.mrb[0].mxu0
  %v2113 = vadd.f32 %v1916, %v2112
  %v2114 = vpop.f32.mrb[0].mxu0
  %v2115 = vpop.f32.mrb[0].mxu0
  %v2116 = vadd.f32 %v1916, %v2115
  %v2117 = vpop.f32.mrb[0].mxu0
  %2118 = vmatprep.mubr.bf16.mxu0 0
  %2119 = vmatmul.mubr.bf16.gmra.mrb[0].mxu0 %v1892
  %v2120 = vpop.f32.mrb[0].mxu0
  %v2121 = vadd.f32 %v1916, %v2120
  %v2122 = vpop.f32.mrb[0].mxu0
  %v2123 = vpop.f32.mrb[0].mxu0
  %v2124 = vadd.f32 %v1916, %v2123
  %v2125 = vpop.f32.mrb[0].mxu0
  %2126 = vdwg.mxu0
  %v2127 = vpack.c.bf16 %v2004, %v2001
  %v2128 = vpack.c.bf16 %v2012, %v2009
  %v2129 = vpack.c.bf16 %v2020, %v2017
  %v2130 = vpack.c.bf16 %v2028, %v2025
  %v2131 = vpack.c.bf16 %v2036, %v2033
  %v2132 = vpack.c.bf16 %v2044, %v2041
  %v2133 = vpack.c.bf16 %v2052, %v2049
  %v2134 = vpack.c.bf16 %v2060, %v2057
  %v2135 = vpack.c.bf16 %v2068, %v2065
  %v2136 = vpack.c.bf16 %v2076, %v2073
  %v2137 = vpack.c.bf16 %v2084, %v2081
  %v2138 = vpack.c.bf16 %v2092, %v2089
  %v2139 = vpack.c.bf16 %v2100, %v2097
  %v2140 = vpack.c.bf16 %v2108, %v2105
  %v2141 = vpack.c.bf16 %v2116, %v2113
  %v2142 = vpack.c.bf16 %v2124, %v2121
  %v2143 = vld [vmem:[%s4] sm:$0xff]
  %v2144 = vld [vmem:[%s4 + $0x8] sm:$0xff]
  %v2147 = vunpack.c.l.b16 %v2143
  %v2148 = vunpack.c.h.b16 %v2143
  %v2149 = vunpack.c.l.b16 %v2144
  %v2150 = vunpack.c.h.b16 %v2144
  %v2151 = vpack.c.b16 %v2149, %v2147
  %v2152 = vpack.c.b16 %v2150, %v2148
  %2155 = vmatprep.subr.bf16.mxu0 0
  %2156 = vmatpush1.bf16.msra.mxu0 %v2127
  %2157 = vmatprep.subr.bf16.mxu0 0
  %2158 = vmatpush1.bf16.msra.mxu0 %v2128
  %2159 = vmatprep.subr.bf16.mxu0 0
  %2160 = vmatpush1.bf16.msra.mxu0 %v2129
  %2161 = vmatprep.subr.bf16.mxu0 0
  %2162 = vmatpush1.bf16.msra.mxu0 %v2130
  %2163 = vmatprep.subr.bf16.mxu0 0
  %2164 = vmatpush1.bf16.msra.mxu0 %v2131
  %2165 = vmatprep.subr.bf16.mxu0 0
  %2166 = vmatpush1.bf16.msra.mxu0 %v2132
  %2167 = vmatprep.subr.bf16.mxu0 0
  %2168 = vmatpush1.bf16.msra.mxu0 %v2133
  %2169 = vmatprep.subr.bf16.mxu0 0
  %2170 = vmatpush1.bf16.msra.mxu0 %v2134
  %2171 = vmatprep.subr.bf16.mxu0 0
  %2172 = vmatpush1.bf16.msra.mxu0 %v2135
  %2173 = vmatprep.subr.bf16.mxu0 0
  %2174 = vmatpush1.bf16.msra.mxu0 %v2136
  %2175 = vmatprep.subr.bf16.mxu0 0
  %2176 = vmatpush1.bf16.msra.mxu0 %v2137
  %2177 = vmatprep.subr.bf16.mxu0 0
  %2178 = vmatpush1.bf16.msra.mxu0 %v2138
  %2179 = vmatprep.subr.bf16.mxu0 0
  %2180 = vmatpush1.bf16.msra.mxu0 %v2139
  %2181 = vmatprep.subr.bf16.mxu0 0
  %2182 = vmatpush1.bf16.msra.mxu0 %v2140
  %2183 = vmatprep.subr.bf16.mxu0 0
  %2184 = vmatpush1.bf16.msra.mxu0 %v2141
  %2185 = vmatprep.subr.bf16.mxu0 0
  %2186 = vmatpush1.bf16.msra.mxu0 %v2142
  %2187 = vmatprep.mubr.bf16.mxu0 %v2152
  %2188 = vmatmul.mubr.bf16.gmra.mrb[0].mxu0 %v2151
  %v2189 = vpop.f32.mrb[0].mxu0
  %v2190 = vadd.f32 0.0, %v2189
  %v2191 = vpop.f32.mrb[0].mxu0
  %v2192 = vpop.f32.mrb[0].mxu0
  %v2193 = vadd.f32 0.0, %v2192
  %v2194 = vpop.f32.mrb[0].mxu0
  %2195 = vdwg.mxu0
  %2196 = vst [vmem:[%s5] sm:$0xff] %v2190
  %2197 = vst [vmem:[%s5 + $0x8] sm:$0xff] %v2193
  // Predicated region
  $region22: #{simple_gnn_encoder_pallas.1} parent=0 // pred_check
    _
  $region23: #{simple_gnn_encoder_pallas.1} parent=0 // pred_check_branch
    %2199 = sbr.rel (0) target = $region25
  $region24: #{simple_gnn_encoder_pallas.1} parent=0 // pred_region
    _
  $region25: #{simple_gnn_encoder_pallas.1} parent=0 // pred_fallthru
    _
  // Predicated region
  $region26: #{simple_gnn_encoder_pallas.1} parent=0 // pred_check
    _
  $region27: #{simple_gnn_encoder_pallas.1} parent=0 // pred_check_branch
    %2201 = sbr.rel (0) target = $region29
  $region28: #{simple_gnn_encoder_pallas.1} parent=0 // pred_region
    _
  $region29: #{simple_gnn_encoder_pallas.1} parent=0 // pred_fallthru
    _

</llo_original>
